<compile_context>
chip_gen: v7x
topology: tpu7x:2x2x1
jax: 0.10.0
libtpu: 0.0.40
codegen_flags: <defaults>
</compile_context>

<pallas_src>
import jax
import jax.numpy as jnp
from jax.experimental import pallas as pl
from jax.experimental.pallas import tpu as pltpu

# Scoped VMEM budget: sized against v7x's 64 MiB/TensorCore with headroom;
# also valid on v5e / v6e (128 MiB physical).
_VMEM_LIMIT_BYTES = 48 * 1024 * 1024


def _round_up(x, m):
    return ((x + m - 1) // m) * m


def _full_spec(shape):
    nd = len(shape)
    return pl.BlockSpec(shape, lambda i, _nd=nd: (0,) * _nd)


# ---------------------------------------------------------------------------
# Kernel A: attention scores + softmax + context vector + GRU cell.
# ---------------------------------------------------------------------------
def attention_gru_kernel(
    emb_ref,     # [B, E]    bf16  embedded input token
    h_ref,       # [B, H]    f32   previous decoder hidden state
    enc_ref,     # [B, S, H] bf16  encoder outputs (batch-major)
    enct_ref,    # [B, S, H] f32   precomputed attn_EO(enc_output)  (hoisted)
    whcat_ref,   # [H, 4H]   bf16  [W_dhs | W_hh]  fused h-path weight
    bhcat_ref,   # [1, 4H]   f32   [b_dhs | b_hh]
    wcom_ref,    # [1, H]    f32   attn_COM weight row
    bcom_ref,    # [1, 1]    f32
    wihe_ref,    # [E, 3H]   bf16  GRU W_ih (embedding part)
    wihc_ref,    # [H, 3H]   bf16  GRU W_ih (context part)
    bih_ref,     # [1, 3H]   f32
    attn_ref,    # out [B, S] f32  attention weights
    hnew_ref,    # out [B, H] f32  new hidden state
    hb16_ref,    # out [B, H] bf16 new hidden state (feeds vocab projection)
):
    h = h_ref[...]                                   # [B, H] f32
    H = h.shape[1]

    # Fused h-path matmul: [dec_t | gh] = h @ [W_dhs | W_hh]  (one MXU push).
    hcat = (jnp.dot(h.astype(jnp.bfloat16), whcat_ref[...],
                    preferred_element_type=jnp.float32) + bhcat_ref[...])      # [B, 4H]
    dec_t = hcat[:, :H]                              # [B, H]   (aligned when H % 128 == 0)
    gh = hcat[:, H:]                                 # [B, 3H]

    # Attention scores; the encoder-side projection is precomputed outside the
    # per-step path, only the tanh + COM reduction remain here.  The lane-dim
    # reduction goes to the XLU (free slot vs. the MXU/VPU work).
    normed = jnp.tanh(dec_t[:, None, :] + enct_ref[...])                       # [B, S, H] f32
    scores = (jnp.sum(normed * wcom_ref[...][None, :, :], axis=-1)
              + bcom_ref[...])                                                 # [B, S]

    # Softmax over the source-length axis (f32).
    m = jnp.max(scores, axis=-1, keepdims=True)
    e = jnp.exp(scores - m)
    attn = e / jnp.sum(e, axis=-1, keepdims=True)                              # [B, S]
    attn_ref[...] = attn

    # Context vector on the MXU: (B,1,S) x (B,S,H) -> (B,1,H).
    context = jnp.einsum(
        "bqs,bsh->bqh", attn[:, None, :].astype(jnp.bfloat16), enc_ref[...],
        preferred_element_type=jnp.float32)[:, 0, :]                           # [B, H]

    # GRU cell, PyTorch gate order (r, z, n).  W_ih is pre-split into the
    # embedding / context parts so no in-kernel concatenation is needed.
    gi = (jnp.dot(emb_ref[...], wihe_ref[...], preferred_element_type=jnp.float32)
          + jnp.dot(context.astype(jnp.bfloat16), wihc_ref[...],
                    preferred_element_type=jnp.float32)
          + bih_ref[...])                                                      # [B, 3H]
    i_r, i_z, i_n = gi[:, :H], gi[:, H:2 * H], gi[:, 2 * H:]
    h_r, h_z, h_n = gh[:, :H], gh[:, H:2 * H], gh[:, 2 * H:]
    r = jax.nn.sigmoid(i_r + h_r)
    z = jax.nn.sigmoid(i_z + h_z)
    n = jnp.tanh(i_n + r * h_n)
    h_new = (1.0 - z) * n + z * h
    hnew_ref[...] = h_new
    hb16_ref[...] = h_new.astype(jnp.bfloat16)


# ---------------------------------------------------------------------------
# Kernel B: vocab projection, tiled (and megacore-parallel) over V.
# ---------------------------------------------------------------------------
def vocab_projection_kernel(h_ref, w_ref, b_ref, out_ref):
    out_ref[...] = (jnp.dot(h_ref[...], w_ref[...],
                            preferred_element_type=jnp.float32) + b_ref[...])


# ---------------------------------------------------------------------------
# One-time (per-model) weight packing: fusion / bf16 cast / vocab padding.
# ---------------------------------------------------------------------------
def prepare_decoder_params(params, *, vocab_tile=512):
    bf = jnp.bfloat16
    V = params["W_fc"].shape[1]
    v128 = _round_up(V, 128)
    tn = min(vocab_tile, v128)
    assert tn % 128 == 0, "vocab tile must be a multiple of 128 (lane width)"
    v_pad = _round_up(V, tn)

    w_fc, b_fc = params["W_fc"], params["b_fc"]
    if v_pad != V:
        w_fc = jnp.pad(w_fc, ((0, 0), (0, v_pad - V)))
        b_fc = jnp.pad(b_fc, ((0, 0), (0, v_pad - V)))

    return {
        "embedding": params["embedding"],
        "W_h_cat": jnp.concatenate([params["W_dhs"], params["W_hh"]], axis=1).astype(bf),
        "b_h_cat": jnp.concatenate([params["b_dhs"], params["b_hh"]], axis=1),
        "W_eo": params["W_eo"].astype(bf),
        "b_eo": params["b_eo"],
        "W_com": params["W_com"],
        "b_com": params["b_com"],
        "W_ih_e": params["W_ih_e"].astype(bf),
        "W_ih_c": params["W_ih_c"].astype(bf),
        "b_ih": params["b_ih"],
        "W_fc": w_fc.astype(bf),
        "b_fc": b_fc,
        "vocab_size": V,
        "vocab_tile": tn,
        "hidden": params["W_dhs"].shape[0],
    }


def precompute_encoder_state(enc_output, prep):
    """Step-invariant encoder-side work (hoisted out of the decode loop):
    transpose to batch-major and apply attn_EO once per source sequence."""
    enc = jnp.transpose(enc_output, (1, 0, 2))             # [B, S, H]
    enc_t = (jnp.einsum("bsh,hk->bsk", enc.astype(jnp.bfloat16), prep["W_eo"],
                        preferred_element_type=jnp.float32) + prep["b_eo"])
    return enc.astype(jnp.bfloat16), enc_t                 # (bf16 enc, f32 enc_t)


# ---------------------------------------------------------------------------
# Per-step decoder call.
# ---------------------------------------------------------------------------
def rnn_decoder_step(x, dec_hs, enc_state, prep):
    enc_b16, enc_t = enc_state
    B = x.shape[0]
    _, S, H = enc_t.shape
    V, tn = prep["vocab_size"], prep["vocab_tile"]
    v_pad = prep["W_fc"].shape[1]
    E = prep["embedding"].shape[1]

    emb = prep["embedding"][x[:, 0]].astype(jnp.bfloat16)  # [B, E]  (XLA gather)
    h0 = dec_hs[0]                                         # [B, H]  f32

    ins_a = (emb, h0, enc_b16, enc_t,
             prep["W_h_cat"], prep["b_h_cat"],
             prep["W_com"], prep["b_com"],
             prep["W_ih_e"], prep["W_ih_c"], prep["b_ih"])

    cost_a = pl.CostEstimate(
        flops=int(2 * B * H * 4 * H + 4 * B * S * H
                  + 2 * B * (E + H) * 3 * H + 12 * B * H),
        transcendentals=int(B * S * H + B * S + 3 * B * H),
        bytes_accessed=int(sum(a.size * a.dtype.itemsize for a in ins_a)
                           + (B * S + B * H) * 4 + B * H * 2))

    attn, h_new, h_b16 = pl.pallas_call(
        attention_gru_kernel,
        out_shape=(jax.ShapeDtypeStruct((B, S), jnp.float32),
                   jax.ShapeDtypeStruct((B, H), jnp.float32),
                   jax.ShapeDtypeStruct((B, H), jnp.bfloat16)),
        grid=(1,),
        in_specs=[_full_spec(a.shape) for a in ins_a],
        out_specs=(_full_spec((B, S)), _full_spec((B, H)), _full_spec((B, H))),
        compiler_params=pltpu.CompilerParams(
            dimension_semantics=("arbitrary",),
            vmem_limit_bytes=_VMEM_LIMIT_BYTES),
        cost_estimate=cost_a,
    )(*ins_a)

    # Vocab projection: stream W_fc as lane-dense (H, tn) tiles over a
    # `parallel` grid axis; h / bias blocks with constant or tiled index maps.
    cost_b = pl.CostEstimate(
        flops=int(2 * B * H * v_pad),
        transcendentals=0,
        bytes_accessed=int(H * v_pad * 2 + v_pad * 4 + B * H * 2 + B * v_pad * 4))

    fc_pad = pl.pallas_call(
        vocab_projection_kernel,
        out_shape=jax.ShapeDtypeStruct((B, v_pad), jnp.float32),
        grid=(v_pad // tn,),
        in_specs=[
            pl.BlockSpec((B, H), lambda j: (0, 0)),     # resident activation
            pl.BlockSpec((H, tn), lambda j: (0, j)),    # streamed weight tile
            pl.BlockSpec((1, tn), lambda j: (0, j)),    # streamed bias tile
        ],
        out_specs=pl.BlockSpec((B, tn), lambda j: (0, j)),
        compiler_params=pltpu.CompilerParams(
            dimension_semantics=("parallel",),
            vmem_limit_bytes=_VMEM_LIMIT_BYTES),
        cost_estimate=cost_b,
    )(h_b16, prep["W_fc"], prep["b_fc"])

    fc_out = fc_pad[:, :V] if v_pad != V else fc_pad
    return fc_out, h_new[None, :, :], attn[:, :, None]


def rnn_decoder_forward(x, dec_hs, enc_output, params, *, vocab_tile=512):
    """One-shot convenience API matching RnnDecoder.forward.

    In an autoregressive decode loop, call prepare_decoder_params once per
    model and precompute_encoder_state once per source sequence; only
    rnn_decoder_step runs per generated token.
    """
    # TODO(synk): for full multi-step decoding, fuse the token loop into one
    # kernel (h carried in VMEM scratch over a step grid axis) so the GRU /
    # attention weights are DMA'd once per sequence instead of once per step.
    prep = prepare_decoder_params(params, vocab_tile=vocab_tile)
    enc_state = precompute_encoder_state(enc_output, prep)
    return rnn_decoder_step(x, dec_hs, enc_state, prep)


# ---------------------------------------------------------------------------
# Deterministic parameter construction (synthetic, no checkpoint load).
# Weights stored pre-transposed: (in_features, out_features).
# ---------------------------------------------------------------------------
def make_params(key, vocab_size, embedding_dim, hidden_units):
    E, H, V = embedding_dim, hidden_units, vocab_size
    ks = jax.random.split(key, 12)
    s = 0.1
    return {
        "embedding": jax.random.normal(ks[0], (V, E), jnp.float32) * s,
        "W_dhs": jax.random.normal(ks[1], (H, H), jnp.float32) * s,
        "b_dhs": jax.random.normal(ks[2], (1, H), jnp.float32) * s,
        "W_eo":  jax.random.normal(ks[3], (H, H), jnp.float32) * s,
        "b_eo":  jax.random.normal(ks[4], (1, H), jnp.float32) * s,
        "W_com": jax.random.normal(ks[5], (1, H), jnp.float32) * s,   # Linear(H -> 1)
        "b_com": jax.random.normal(ks[6], (1, 1), jnp.float32) * s,
        # GRU W_ih is [3H, E+H] in torch; split & transpose -> (E,3H), (H,3H)
        "W_ih_e": jax.random.normal(ks[7], (E, 3 * H), jnp.float32) * s,
        "W_ih_c": jax.random.normal(ks[8], (H, 3 * H), jnp.float32) * s,
        "b_ih":   jax.random.normal(ks[9], (1, 3 * H), jnp.float32) * s,
        "W_hh":   jax.random.normal(ks[10], (H, 3 * H), jnp.float32) * s,
        "b_hh":   jax.random.normal(ks[11], (1, 3 * H), jnp.float32) * s,
        "W_fc": jax.random.normal(jax.random.fold_in(key, 100), (H, V), jnp.float32) * s,
        "b_fc": jax.random.normal(jax.random.fold_in(key, 101), (1, V), jnp.float32) * s,
    }


# ---------------------------------------------------------------------------
# Pure-JAX reference: same math as the PyTorch module, with the same
# bf16-matmul-operand / f32-accumulation policy as the kernels so the
# comparison tolerance can stay tight.
# ---------------------------------------------------------------------------
def reference_forward(x, dec_hs, enc_output, p):
    bf, f32 = jnp.bfloat16, jnp.float32
    emb = p["embedding"][x[:, 0]].astype(bf)               # [B, E]
    h = dec_hs[0]                                          # [B, H] f32
    enc = jnp.transpose(enc_output, (1, 0, 2))             # [B, S, H]
    enc_b = enc.astype(bf)
    H = h.shape[1]

    enc_t = (jnp.einsum("bsh,hk->bsk", enc_b, p["W_eo"].astype(bf),
                        preferred_element_type=f32) + p["b_eo"])
    w_hcat = jnp.concatenate([p["W_dhs"], p["W_hh"]], axis=1).astype(bf)
    b_hcat = jnp.concatenate([p["b_dhs"], p["b_hh"]], axis=1)
    hcat = jnp.dot(h.astype(bf), w_hcat, preferred_element_type=f32) + b_hcat
    dec_t, gh = hcat[:, :H], hcat[:, H:]

    normed = jnp.tanh(dec_t[:, None, :] + enc_t)
    scores = jnp.sum(normed * p["W_com"][None, :, :], axis=-1) + p["b_com"]
    attn = jax.nn.softmax(scores, axis=-1)                 # [B, S]
    context = jnp.einsum("bs,bsh->bh", attn.astype(bf), enc_b,
                         preferred_element_type=f32)

    gi = (jnp.dot(emb, p["W_ih_e"].astype(bf), preferred_element_type=f32)
          + jnp.dot(context.astype(bf), p["W_ih_c"].astype(bf),
                    preferred_element_type=f32)
          + p["b_ih"])
    i_r, i_z, i_n = gi[:, :H], gi[:, H:2 * H], gi[:, 2 * H:]
    h_r, h_z, h_n = gh[:, :H], gh[:, H:2 * H], gh[:, 2 * H:]
    r = jax.nn.sigmoid(i_r + h_r)
    z = jax.nn.sigmoid(i_z + h_z)
    n = jnp.tanh(i_n + r * h_n)
    h_new = (1.0 - z) * n + z * h
    fc = (jnp.dot(h_new.astype(bf), p["W_fc"].astype(bf),
                  preferred_element_type=f32) + p["b_fc"])
    return fc, h_new[None, :, :], attn[:, :, None]


if __name__ == "__main__":
    # Small but tile-friendly shapes: B fills the 8 sublanes, H is one lane
    # tile (128), V is a multiple of the 512-wide vocab tile.
    B, S, H, E, V = 8, 16, 128, 32, 2048

    key = jax.random.PRNGKey(0)
    k_x, k_h, k_e, k_p = jax.random.split(key, 4)

    x = jax.random.randint(k_x, (B, 1), 0, V, dtype=jnp.int32)        # [B, 1]
    dec_hs = jax.random.normal(k_h, (1, B, H), jnp.float32)           # [1, B, H]
    enc_output = jax.random.normal(k_e, (S, B, H), jnp.float32)       # [S, B, H]
    params = make_params(k_p, V, E, H)

    fwd = jax.jit(rnn_decoder_forward, static_argnames=("vocab_tile",))
    fc_out, new_dec_hs, attn = jax.block_until_ready(
        fwd(x, dec_hs, enc_output, params, vocab_tile=512))

    fc_ref, hs_ref, aw_ref = reference_forward(x, dec_hs, enc_output, params)

    assert fc_out.shape == (B, V)
    assert new_dec_hs.shape == (1, B, H)
    assert attn.shape == (B, S, 1)
    assert jnp.allclose(attn, aw_ref, atol=1e-3, rtol=1e-3), \
        float(jnp.max(jnp.abs(attn - aw_ref)))
    assert jnp.allclose(new_dec_hs, hs_ref, atol=5e-3, rtol=5e-3), \
        float(jnp.max(jnp.abs(new_dec_hs - hs_ref)))
    assert jnp.allclose(fc_out, fc_ref, atol=1e-2, rtol=1e-2), \
        float(jnp.max(jnp.abs(fc_out - fc_ref)))
    # attention weights must sum to 1 over the source axis
    assert jnp.allclose(jnp.sum(attn, axis=1), 1.0, atol=1e-4)

    print("KERNEL_OK")
</pallas_src>

<mosaic_0001>
module attributes {stable_mosaic.version = 11 : i64} {
  func.func @vocab_projection_kernel(%arg0: i32, %arg1: memref<8x128xbf16, #tpu.memory_space<vmem>>, %arg2: memref<128x512xbf16, #tpu.memory_space<vmem>>, %arg3: memref<1x512xf32, #tpu.memory_space<vmem>>, %arg4: memref<8x512xf32, #tpu.memory_space<vmem>>) attributes {dimension_semantics = [#tpu.dimension_semantics<parallel>], iteration_bounds = array<i64: 4>, scalar_prefetch = 0 : i64, scratch_operands = 0 : i64, tpu.core_type = #tpu.core_type<tc>, window_params = [{pipeline_mode = #tpu.pipeline_mode<synchronous>, transform_indices = @transform_0, window_bounds = array<i64: 8, 128>}, {transform_indices = @transform_1, window_bounds = array<i64: 128, 512>}, {transform_indices = @transform_2, window_bounds = array<i64: 1, 512>}, {transform_indices = @transform_3, window_bounds = array<i64: 8, 512>}]} {
    %c0 = arith.constant 0 : index
    %c0_0 = arith.constant 0 : index
    %0 = vector.load %arg1[%c0, %c0_0] : memref<8x128xbf16, #tpu.memory_space<vmem>>, vector<8x128xbf16>
    %c0_1 = arith.constant 0 : index
    %c0_2 = arith.constant 0 : index
    %1 = vector.load %arg2[%c0_1, %c0_2] : memref<128x512xbf16, #tpu.memory_space<vmem>>, vector<128x512xbf16>
    %cst = arith.constant dense<0.000000e+00> : vector<8x512xf32>
    %2 = tpu.matmul %0, %1, %cst {dimension_numbers = #tpu.dot_dimension_numbers<[1], [0], [0], [1], [0, 0, 1, 1], [], []>} : vector<8x128xbf16>, vector<128x512xbf16>, vector<8x512xf32> -> vector<8x512xf32>
    %c0_3 = arith.constant 0 : index
    %c0_4 = arith.constant 0 : index
    %3 = vector.load %arg3[%c0_3, %c0_4] : memref<1x512xf32, #tpu.memory_space<vmem>>, vector<1x512xf32>
    %4 = vector.broadcast %3 : vector<1x512xf32> to vector<8x512xf32>
    %5 = arith.addf %2, %4 : vector<8x512xf32>
    %c0_5 = arith.constant 0 : index
    %c0_6 = arith.constant 0 : index
    %6 = vector.load %arg4[%c0_5, %c0_6] : memref<8x512xf32, #tpu.memory_space<vmem>>, vector<8x512xf32>
    tpu.vector_store %arg4[%c0_5, %c0_6], %5 {strides = array<i32>} : memref<8x512xf32, #tpu.memory_space<vmem>>, vector<8x512xf32>,
    return
  }
  func.func @transform_0(%arg0: i32) -> (i32, i32) {
    %c0_i32 = arith.constant 0 : i32
    %c0_i32_0 = arith.constant 0 : i32
    %c0_i32_1 = arith.constant 0 : i32
    return %c0_i32, %c0_i32_0 : i32, i32
  }
  func.func @transform_1(%arg0: i32) -> (i32, i32) {
    %c0_i32 = arith.constant 0 : i32
    %c0_i32_0 = arith.constant 0 : i32
    return %c0_i32, %arg0 : i32, i32
  }
  func.func @transform_2(%arg0: i32) -> (i32, i32) {
    %c0_i32 = arith.constant 0 : i32
    %c0_i32_0 = arith.constant 0 : i32
    return %c0_i32, %arg0 : i32, i32
  }
  func.func @transform_3(%arg0: i32) -> (i32, i32) {
    %c0_i32 = arith.constant 0 : i32
    %c0_i32_0 = arith.constant 0 : i32
    return %c0_i32, %arg0 : i32, i32
  }
}

module attributes {stable_mosaic.version = 11 : i64} {
  func.func @attention_gru_kernel(%arg0: i32, %arg1: memref<8x32xbf16, #tpu.memory_space<vmem>>, %arg2: memref<8x128xf32, #tpu.memory_space<vmem>>, %arg3: memref<8x16x128xbf16, #tpu.memory_space<vmem>>, %arg4: memref<8x16x128xf32, #tpu.memory_space<vmem>>, %arg5: memref<128x512xbf16, #tpu.memory_space<vmem>>, %arg6: memref<1x512xf32, #tpu.memory_space<vmem>>, %arg7: memref<1x128xf32, #tpu.memory_space<vmem>>, %arg8: memref<1x1xf32, #tpu.memory_space<vmem>>, %arg9: memref<32x384xbf16, #tpu.memory_space<vmem>>, %arg10: memref<128x384xbf16, #tpu.memory_space<vmem>>, %arg11: memref<1x384xf32, #tpu.memory_space<vmem>>, %arg12: memref<8x16xf32, #tpu.memory_space<vmem>>, %arg13: memref<8x128xf32, #tpu.memory_space<vmem>>, %arg14: memref<8x128xbf16, #tpu.memory_space<vmem>>) attributes {dimension_semantics = [#tpu.dimension_semantics<arbitrary>], iteration_bounds = array<i64: 1>, scalar_prefetch = 0 : i64, scratch_operands = 0 : i64, tpu.core_type = #tpu.core_type<tc>, window_params = [{pipeline_mode = #tpu.pipeline_mode<synchronous>, transform_indices = @transform_0, window_bounds = array<i64: 8, 32>}, {pipeline_mode = #tpu.pipeline_mode<synchronous>, transform_indices = @transform_1, window_bounds = array<i64: 8, 128>}, {pipeline_mode = #tpu.pipeline_mode<synchronous>, transform_indices = @transform_2, window_bounds = array<i64: 8, 16, 128>}, {pipeline_mode = #tpu.pipeline_mode<synchronous>, transform_indices = @transform_3, window_bounds = array<i64: 8, 16, 128>}, {pipeline_mode = #tpu.pipeline_mode<synchronous>, transform_indices = @transform_4, window_bounds = array<i64: 128, 512>}, {pipeline_mode = #tpu.pipeline_mode<synchronous>, transform_indices = @transform_5, window_bounds = array<i64: 1, 512>}, {pipeline_mode = #tpu.pipeline_mode<synchronous>, transform_indices = @transform_6, window_bounds = array<i64: 1, 128>}, {pipeline_mode = #tpu.pipeline_mode<synchronous>, transform_indices = @transform_7, window_bounds = array<i64: 1, 1>}, {pipeline_mode = #tpu.pipeline_mode<synchronous>, transform_indices = @transform_8, window_bounds = array<i64: 32, 384>}, {pipeline_mode = #tpu.pipeline_mode<synchronous>, transform_indices = @transform_9, window_bounds = array<i64: 128, 384>}, {pipeline_mode = #tpu.pipeline_mode<synchronous>, transform_indices = @transform_10, window_bounds = array<i64: 1, 384>}, {pipeline_mode = #tpu.pipeline_mode<synchronous>, transform_indices = @transform_11, window_bounds = array<i64: 8, 16>}, {pipeline_mode = #tpu.pipeline_mode<synchronous>, transform_indices = @transform_12, window_bounds = array<i64: 8, 128>}, {pipeline_mode = #tpu.pipeline_mode<synchronous>, transform_indices = @transform_13, window_bounds = array<i64: 8, 128>}]} {
    %c0 = arith.constant 0 : index
    %c0_0 = arith.constant 0 : index
    %0 = vector.load %arg2[%c0, %c0_0] : memref<8x128xf32, #tpu.memory_space<vmem>>, vector<8x128xf32>
    %1 = arith.truncf %0 : vector<8x128xf32> to vector<8x128xbf16>
    %c0_1 = arith.constant 0 : index
    %c0_2 = arith.constant 0 : index
    %2 = vector.load %arg5[%c0_1, %c0_2] : memref<128x512xbf16, #tpu.memory_space<vmem>>, vector<128x512xbf16>
    %cst = arith.constant dense<0.000000e+00> : vector<8x512xf32>
    %3 = tpu.matmul %1, %2, %cst {dimension_numbers = #tpu.dot_dimension_numbers<[1], [0], [0], [1], [0, 0, 1, 1], [], []>} : vector<8x128xbf16>, vector<128x512xbf16>, vector<8x512xf32> -> vector<8x512xf32>
    %c0_3 = arith.constant 0 : index
    %c0_4 = arith.constant 0 : index
    %4 = vector.load %arg6[%c0_3, %c0_4] : memref<1x512xf32, #tpu.memory_space<vmem>>, vector<1x512xf32>
    %5 = vector.broadcast %4 : vector<1x512xf32> to vector<8x512xf32>
    %6 = arith.addf %3, %5 : vector<8x512xf32>
    %7 = vector.extract_strided_slice %6 {offsets = [0, 0], sizes = [8, 128], strides = [1, 1]} : vector<8x512xf32> to vector<8x128xf32>
    %8 = vector.extract_strided_slice %6 {offsets = [0, 128], sizes = [8, 384], strides = [1, 1]} : vector<8x512xf32> to vector<8x384xf32>
    %9 = vector.shape_cast %7 : vector<8x128xf32> to vector<8x1x128xf32>
    %c0_5 = arith.constant 0 : index
    %c0_6 = arith.constant 0 : index
    %c0_7 = arith.constant 0 : index
    %10 = vector.load %arg4[%c0_5, %c0_6, %c0_7] : memref<8x16x128xf32, #tpu.memory_space<vmem>>, vector<8x16x128xf32>
    %11 = vector.broadcast %9 : vector<8x1x128xf32> to vector<8x16x128xf32>
    %12 = arith.addf %11, %10 : vector<8x16x128xf32>
    %13 = math.tanh %12 : vector<8x16x128xf32>
    %c0_8 = arith.constant 0 : index
    %c0_9 = arith.constant 0 : index
    %14 = vector.load %arg7[%c0_8, %c0_9] : memref<1x128xf32, #tpu.memory_space<vmem>>, vector<1x128xf32>
    %15 = vector.shape_cast %14 : vector<1x128xf32> to vector<1x1x128xf32>
    %16 = vector.broadcast %15 : vector<1x1x128xf32> to vector<8x16x128xf32>
    %17 = arith.mulf %13, %16 : vector<8x16x128xf32>
    %cst_10 = arith.constant dense<0.000000e+00> : vector<8x16xf32>
    %18 = vector.multi_reduction <add>, %17, %cst_10 [2] : vector<8x16x128xf32> to vector<8x16xf32>
    %c0_11 = arith.constant 0 : index
    %c0_12 = arith.constant 0 : index
    %19 = vector.load %arg8[%c0_11, %c0_12] : memref<1x1xf32, #tpu.memory_space<vmem>>, vector<1x1xf32>
    %20 = vector.broadcast %19 : vector<1x1xf32> to vector<8x16xf32>
    %21 = arith.addf %18, %20 : vector<8x16xf32>
    %cst_13 = arith.constant dense<0xFF800000> : vector<8xf32>
    %22 = vector.multi_reduction <maximumf>, %21, %cst_13 [1] : vector<8x16xf32> to vector<8xf32>
    %23 = vector.shape_cast %22 : vector<8xf32> to vector<8x1xf32>
    %24 = vector.broadcast %23 : vector<8x1xf32> to vector<8x16xf32>
    %25 = arith.subf %21, %24 : vector<8x16xf32>
    %26 = math.exp %25 : vector<8x16xf32>
    %cst_14 = arith.constant dense<0.000000e+00> : vector<8xf32>
    %27 = vector.multi_reduction <add>, %26, %cst_14 [1] : vector<8x16xf32> to vector<8xf32>
    %28 = vector.shape_cast %27 : vector<8xf32> to vector<8x1xf32>
    %29 = vector.broadcast %28 : vector<8x1xf32> to vector<8x16xf32>
    %30 = arith.divf %26, %29 : vector<8x16xf32>
    %c0_15 = arith.constant 0 : index
    %c0_16 = arith.constant 0 : index
    %31 = vector.load %arg12[%c0_15, %c0_16] : memref<8x16xf32, #tpu.memory_space<vmem>>, vector<8x16xf32>
    tpu.vector_store %arg12[%c0_15, %c0_16], %30 {strides = array<i32>} : memref<8x16xf32, #tpu.memory_space<vmem>>, vector<8x16xf32>,
    %32 = vector.shape_cast %30 : vector<8x16xf32> to vector<8x1x16xf32>
    %33 = arith.truncf %32 : vector<8x1x16xf32> to vector<8x1x16xbf16>
    %c0_17 = arith.constant 0 : index
    %c0_18 = arith.constant 0 : index
    %c0_19 = arith.constant 0 : index
    %34 = vector.load %arg3[%c0_17, %c0_18, %c0_19] : memref<8x16x128xbf16, #tpu.memory_space<vmem>>, vector<8x16x128xbf16>
    "tpu.trace_start"() <{level = 10 : i32, message = "bqs,bsh->bqh"}> : () -> ()
    %cst_20 = arith.constant dense<0.000000e+00> : vector<8x1x128xf32>
    %35 = tpu.matmul %33, %34, %cst_20 {dimension_numbers = #tpu.dot_dimension_numbers<[2], [1], [1], [2], [0, 0, 0, 1, 1, 2], [0], [0]>} : vector<8x1x16xbf16>, vector<8x16x128xbf16>, vector<8x1x128xf32> -> vector<8x1x128xf32>
    "tpu.trace_stop"() : () -> ()
    %36 = vector.shape_cast %35 : vector<8x1x128xf32> to vector<8x128xf32>
    %c0_21 = arith.constant 0 : index
    %c0_22 = arith.constant 0 : index
    %37 = vector.load %arg1[%c0_21, %c0_22] : memref<8x32xbf16, #tpu.memory_space<vmem>>, vector<8x32xbf16>
    %c0_23 = arith.constant 0 : index
    %c0_24 = arith.constant 0 : index
    %38 = vector.load %arg9[%c0_23, %c0_24] : memref<32x384xbf16, #tpu.memory_space<vmem>>, vector<32x384xbf16>
    %cst_25 = arith.constant dense<0.000000e+00> : vector<8x384xf32>
    %39 = tpu.matmul %37, %38, %cst_25 {dimension_numbers = #tpu.dot_dimension_numbers<[1], [0], [0], [1], [0, 0, 1, 1], [], []>} : vector<8x32xbf16>, vector<32x384xbf16>, vector<8x384xf32> -> vector<8x384xf32>
    %40 = arith.truncf %36 : vector<8x128xf32> to vector<8x128xbf16>
    %c0_26 = arith.constant 0 : index
    %c0_27 = arith.constant 0 : index
    %41 = vector.load %arg10[%c0_26, %c0_27] : memref<128x384xbf16, #tpu.memory_space<vmem>>, vector<128x384xbf16>
    %cst_28 = arith.constant dense<0.000000e+00> : vector<8x384xf32>
    %42 = tpu.matmul %40, %41, %cst_28 {dimension_numbers = #tpu.dot_dimension_numbers<[1], [0], [0], [1], [0, 0, 1, 1], [], []>} : vector<8x128xbf16>, vector<128x384xbf16>, vector<8x384xf32> -> vector<8x384xf32>
    %43 = arith.addf %39, %42 : vector<8x384xf32>
    %c0_29 = arith.constant 0 : index
    %c0_30 = arith.constant 0 : index
    %44 = vector.load %arg11[%c0_29, %c0_30] : memref<1x384xf32, #tpu.memory_space<vmem>>, vector<1x384xf32>
    %45 = vector.broadcast %44 : vector<1x384xf32> to vector<8x384xf32>
    %46 = arith.addf %43, %45 : vector<8x384xf32>
    %47 = vector.extract_strided_slice %46 {offsets = [0, 0], sizes = [8, 128], strides = [1, 1]} : vector<8x384xf32> to vector<8x128xf32>
    %48 = vector.extract_strided_slice %46 {offsets = [0, 128], sizes = [8, 128], strides = [1, 1]} : vector<8x384xf32> to vector<8x128xf32>
    %49 = vector.extract_strided_slice %46 {offsets = [0, 256], sizes = [8, 128], strides = [1, 1]} : vector<8x384xf32> to vector<8x128xf32>
    %50 = vector.extract_strided_slice %8 {offsets = [0, 0], sizes = [8, 128], strides = [1, 1]} : vector<8x384xf32> to vector<8x128xf32>
    %51 = vector.extract_strided_slice %8 {offsets = [0, 128], sizes = [8, 128], strides = [1, 1]} : vector<8x384xf32> to vector<8x128xf32>
    %52 = vector.extract_strided_slice %8 {offsets = [0, 256], sizes = [8, 128], strides = [1, 1]} : vector<8x384xf32> to vector<8x128xf32>
    %53 = arith.addf %47, %50 : vector<8x128xf32>
    %54 = arith.negf %53 : vector<8x128xf32>
    %55 = math.exp %54 : vector<8x128xf32>
    %cst_31 = arith.constant 1.000000e+00 : f32
    %56 = vector.broadcast %cst_31 : f32 to vector<8x128xf32>
    %57 = arith.addf %56, %55 : vector<8x128xf32>
    %58 = arith.divf %56, %57 : vector<8x128xf32>
    %59 = arith.addf %48, %51 : vector<8x128xf32>
    %60 = arith.negf %59 : vector<8x128xf32>
    %61 = math.exp %60 : vector<8x128xf32>
    %cst_32 = arith.constant 1.000000e+00 : f32
    %62 = vector.broadcast %cst_32 : f32 to vector<8x128xf32>
    %63 = arith.addf %62, %61 : vector<8x128xf32>
    %64 = arith.divf %62, %63 : vector<8x128xf32>
    %65 = arith.mulf %58, %52 : vector<8x128xf32>
    %66 = arith.addf %49, %65 : vector<8x128xf32>
    %67 = math.tanh %66 : vector<8x128xf32>
    %cst_33 = arith.constant 1.000000e+00 : f32
    %68 = vector.broadcast %cst_33 : f32 to vector<8x128xf32>
    %69 = arith.subf %68, %64 : vector<8x128xf32>
    %70 = arith.mulf %69, %67 : vector<8x128xf32>
    %71 = arith.mulf %64, %0 : vector<8x128xf32>
    %72 = arith.addf %70, %71 : vector<8x128xf32>
    %c0_34 = arith.constant 0 : index
    %c0_35 = arith.constant 0 : index
    %73 = vector.load %arg13[%c0_34, %c0_35] : memref<8x128xf32, #tpu.memory_space<vmem>>, vector<8x128xf32>
    tpu.vector_store %arg13[%c0_34, %c0_35], %72 {strides = array<i32>} : memref<8x128xf32, #tpu.memory_space<vmem>>, vector<8x128xf32>,
    %74 = arith.truncf %72 : vector<8x128xf32> to vector<8x128xbf16>
    %c0_36 = arith.constant 0 : index
    %c0_37 = arith.constant 0 : index
    %75 = vector.load %arg14[%c0_36, %c0_37] : memref<8x128xbf16, #tpu.memory_space<vmem>>, vector<8x128xbf16>
    tpu.vector_store %arg14[%c0_36, %c0_37], %74 {strides = array<i32>} : memref<8x128xbf16, #tpu.memory_space<vmem>>, vector<8x128xbf16>,
    return
  }
  func.func @transform_0(%arg0: i32) -> (i32, i32) {
    %c0_i32 = arith.constant 0 : i32
    %c0_i32_0 = arith.constant 0 : i32
    %c0_i32_1 = arith.constant 0 : i32
    return %c0_i32, %c0_i32_0 : i32, i32
  }
  func.func @transform_1(%arg0: i32) -> (i32, i32) {
    %c0_i32 = arith.constant 0 : i32
    %c0_i32_0 = arith.constant 0 : i32
    %c0_i32_1 = arith.constant 0 : i32
    return %c0_i32, %c0_i32_0 : i32, i32
  }
  func.func @transform_2(%arg0: i32) -> (i32, i32, i32) {
    %c0_i32 = arith.constant 0 : i32
    %c0_i32_0 = arith.constant 0 : i32
    %c0_i32_1 = arith.constant 0 : i32
    %c0_i32_2 = arith.constant 0 : i32
    return %c0_i32, %c0_i32_0, %c0_i32_1 : i32, i32, i32
  }
  func.func @transform_3(%arg0: i32) -> (i32, i32, i32) {
    %c0_i32 = arith.constant 0 : i32
    %c0_i32_0 = arith.constant 0 : i32
    %c0_i32_1 = arith.constant 0 : i32
    %c0_i32_2 = arith.constant 0 : i32
    return %c0_i32, %c0_i32_0, %c0_i32_1 : i32, i32, i32
  }
  func.func @transform_4(%arg0: i32) -> (i32, i32) {
    %c0_i32 = arith.constant 0 : i32
    %c0_i32_0 = arith.constant 0 : i32
    %c0_i32_1 = arith.constant 0 : i32
    return %c0_i32, %c0_i32_0 : i32, i32
  }
  func.func @transform_5(%arg0: i32) -> (i32, i32) {
    %c0_i32 = arith.constant 0 : i32
    %c0_i32_0 = arith.constant 0 : i32
    %c0_i32_1 = arith.constant 0 : i32
    return %c0_i32, %c0_i32_0 : i32, i32
  }
  func.func @transform_6(%arg0: i32) -> (i32, i32) {
    %c0_i32 = arith.constant 0 : i32
    %c0_i32_0 = arith.constant 0 : i32
    %c0_i32_1 = arith.constant 0 : i32
    return %c0_i32, %c0_i32_0 : i32, i32
  }
  func.func @transform_7(%arg0: i32) -> (i32, i32) {
    %c0_i32 = arith.constant 0 : i32
    %c0_i32_0 = arith.constant 0 : i32
    %c0_i32_1 = arith.constant 0 : i32
    return %c0_i32, %c0_i32_0 : i32, i32
  }
  func.func @transform_8(%arg0: i32) -> (i32, i32) {
    %c0_i32 = arith.constant 0 : i32
    %c0_i32_0 = arith.constant 0 : i32
    %c0_i32_1 = arith.constant 0 : i32
    return %c0_i32, %c0_i32_0 : i32, i32
  }
  func.func @transform_9(%arg0: i32) -> (i32, i32) {
    %c0_i32 = arith.constant 0 : i32
    %c0_i32_0 = arith.constant 0 : i32
    %c0_i32_1 = arith.constant 0 : i32
    return %c0_i32, %c0_i32_0 : i32, i32
  }
  func.func @transform_10(%arg0: i32) -> (i32, i32) {
    %c0_i32 = arith.constant 0 : i32
    %c0_i32_0 = arith.constant 0 : i32
    %c0_i32_1 = arith.constant 0 : i32
    return %c0_i32, %c0_i32_0 : i32, i32
  }
  func.func @transform_11(%arg0: i32) -> (i32, i32) {
    %c0_i32 = arith.constant 0 : i32
    %c0_i32_0 = arith.constant 0 : i32
    %c0_i32_1 = arith.constant 0 : i32
    return %c0_i32, %c0_i32_0 : i32, i32
  }
  func.func @transform_12(%arg0: i32) -> (i32, i32) {
    %c0_i32 = arith.constant 0 : i32
    %c0_i32_0 = arith.constant 0 : i32
    %c0_i32_1 = arith.constant 0 : i32
    return %c0_i32, %c0_i32_0 : i32, i32
  }
  func.func @transform_13(%arg0: i32) -> (i32, i32) {
    %c0_i32 = arith.constant 0 : i32
    %c0_i32_0 = arith.constant 0 : i32
    %c0_i32_1 = arith.constant 0 : i32
    return %c0_i32, %c0_i32_0 : i32, i32
  }
}

</mosaic_0001>

<llo_original>
// kernel: rnn_decoder_forward.3
$region0: #{rnn_decoder_forward.3}
  #allocation0 [shape = 'u32[]', space=smem, size = 0x4, offset = 0x4, fixed_abs, tag = 'smem constant byte address 0x4 - core index']
  #allocation1 [shape = 'u32[144,128]{1,0:T(1,128)}', space=vmem, size = 0x12000, scoped, tag = 'internal scratch']
  %s0 = inlined_call_operand.vmem [shape: bf16[8,128], index: 0, kind: input, shape index: {}]
  %s1 = inlined_call_operand.vmem [shape: bf16[128,2048], index: 1, kind: input, shape index: {}]
  %s2 = inlined_call_operand.vmem [shape: f32[1,2048], index: 2, kind: input, shape index: {}]
  %s3 = inlined_call_operand.hbm [shape: f32[8,2048], index: 3, kind: output, shape index: {}]
  %s4 = sld [smem:[#allocation0]]
  $region68: #{rnn_decoder_forward.3} parent=0
    _
  %s6 = ssub.s32 1, %s4
  %s7 = scalar_select 0, %s6, %s4
  $region1: #{rnn_decoder_forward.3} parent=0
    #allocation2 [shape = 'u8[262144]{0}', space=vmem, size = 0x40000, scoped, tag = 'input window, operand 1']
    #allocation3 [shape = 'u8[32768]{0}', space=vmem, size = 0x8000, scoped, tag = 'output window, operand 0']
    #allocation4 [shape = 's32[2]{0}', space=sflag, size = 0x8, scoped, tag = 'scoped memory for rnn_decoder_forward.3']
    %8 = vsyncpa [#allocation4], 0
    %s9 = scalar_lea.sflag [#allocation4], 1
    %10 = vsyncpa %s9, 0
    loop: start=0, step=1, limit=6
    $region2: #{rnn_decoder_forward.3} parent=1 // loop_pre_header
      _
    $region3: #{rnn_decoder_forward.3} parent=1 // loop_header
      %s12 = sphi 0, %s16
      %p13 = scmp.ge.s32.totalorder %s12, 6
      %s20 = sphi 0, %s20
      %s22 = sphi 0, %s20
      %s23 = sphi 0, %s22
      %s37 = sphi 0, %s23
      %s43 = sphi 0, %s45
      %s46 = sphi 0, %s43
      %s47 = sphi 0, %s46
      %s63 = sphi 0, %s47
      %s69 = sphi 0, %s71
      %s72 = sphi 0, %s69
      %s73 = sphi 0, %s72
      %s89 = sphi 0, %s73
      %s95 = sphi 0, %s97
      %s98 = sphi 0, %s95
      %s99 = sphi 0, %s98
      %s115 = sphi 0, %s99
    $region4: #{rnn_decoder_forward.3} parent=1 // loop_header_branch
      %15 = sbr.rel (%p13) target = $region8
    $region5: #{rnn_decoder_forward.3} parent=1 // loop_body
      %s17 = ssub.s32 %s12, 1
      %s18 = ssub.s32 %s12, 2
      %s19 = sadd.s32 %s12, 1
      %s21 = sadd.s32 %s20, 1
      %p24 = scmp.eq.s32.totalorder %s12, 3
      %p25 = scmp.ne.s32.totalorder %s20, %s22
      %p26 = scmp.eq.s32.totalorder %s12, 0
      %p27 = por %p25, %p26
      %p28 = scmp.ne.s32.totalorder %s20, %s22
      %p29 = scmp.eq.s32.totalorder %s17, 3
      %p30 = por %p28, %p29
      %p31 = scmp.ne.s32.totalorder %s22, %s23
      %p32 = scmp.eq.s32.totalorder %s17, 0
      %p33 = por %p31, %p32
      %p34 = scmp.ne.s32.totalorder %s22, %s23
      %p35 = scmp.eq.s32.totalorder %s18, 3
      %p36 = por %p34, %p35
      %p38 = scmp.ne.s32.totalorder %s23, %s37
      %p39 = scmp.eq.s32.totalorder %s18, 0
      %p40 = por %p38, %p39
      %s41 = ssub.s32 %s12, %s19
      %p42 = scmp.eq.s32.totalorder %s41, 0
      %s44 = sadd.s32 %s43, 1
      %s45 = scalar_select %p42, %s43, %s44
      %p48 = pneg %p42
      %p49 = scmp.eq.s32.totalorder %s12, 3
      %p50 = por %p48, %p49
      %p51 = scmp.ne.s32.totalorder %s43, %s46
      %p52 = scmp.eq.s32.totalorder %s12, 0
      %p53 = por %p51, %p52
      %p54 = scmp.ne.s32.totalorder %s43, %s46
      %p55 = scmp.eq.s32.totalorder %s17, 3
      %p56 = por %p54, %p55
      %p57 = scmp.ne.s32.totalorder %s46, %s47
      %p58 = scmp.eq.s32.totalorder %s17, 0
      %p59 = por %p57, %p58
      %p60 = scmp.ne.s32.totalorder %s46, %s47
      %p61 = scmp.eq.s32.totalorder %s18, 3
      %p62 = por %p60, %p61
      %p64 = scmp.ne.s32.totalorder %s47, %s63
      %p65 = scmp.eq.s32.totalorder %s18, 0
      %p66 = por %p64, %p65
      %s67 = ssub.s32 %s12, %s19
      %p68 = scmp.eq.s32.totalorder %s67, 0
      %s70 = sadd.s32 %s69, 1
      %s71 = scalar_select %p68, %s69, %s70
      %p74 = pneg %p68
      %p75 = scmp.eq.s32.totalorder %s12, 3
      %p76 = por %p74, %p75
      %p77 = scmp.ne.s32.totalorder %s69, %s72
      %p78 = scmp.eq.s32.totalorder %s12, 0
      %p79 = por %p77, %p78
      %p80 = scmp.ne.s32.totalorder %s69, %s72
      %p81 = scmp.eq.s32.totalorder %s17, 3
      %p82 = por %p80, %p81
      %p83 = scmp.ne.s32.totalorder %s72, %s73
      %p84 = scmp.eq.s32.totalorder %s17, 0
      %p85 = por %p83, %p84
      %p86 = scmp.ne.s32.totalorder %s72, %s73
      %p87 = scmp.eq.s32.totalorder %s18, 3
      %p88 = por %p86, %p87
      %p90 = scmp.ne.s32.totalorder %s73, %s89
      %p91 = scmp.eq.s32.totalorder %s18, 0
      %p92 = por %p90, %p91
      %s93 = ssub.s32 %s12, %s19
      %p94 = scmp.eq.s32.totalorder %s93, 0
      %s96 = sadd.s32 %s95, 1
      %s97 = scalar_select %p94, %s95, %s96
      %p100 = pneg %p94
      %p101 = scmp.eq.s32.totalorder %s12, 3
      %p102 = por %p100, %p101
      %p103 = scmp.ne.s32.totalorder %s95, %s98
      %p104 = scmp.eq.s32.totalorder %s12, 0
      %p105 = por %p103, %p104
      %p106 = scmp.ne.s32.totalorder %s95, %s98
      %p107 = scmp.eq.s32.totalorder %s17, 3
      %p108 = por %p106, %p107
      %p109 = scmp.ne.s32.totalorder %s98, %s99
      %p110 = scmp.eq.s32.totalorder %s17, 0
      %p111 = por %p109, %p110
      %p112 = scmp.ne.s32.totalorder %s98, %s99
      %p113 = scmp.eq.s32.totalorder %s18, 3
      %p114 = por %p112, %p113
      %p116 = scmp.ne.s32.totalorder %s99, %s115
      %p117 = scmp.eq.s32.totalorder %s18, 0
      %p118 = por %p116, %p117
      %p119 = scmp.le.s32.totalorder 1, %s12
      %p120 = scmp.lt.s32.totalorder %s12, 5
      %p121 = pnand %p119, %p120
      %p122 = pneg %p121
      // Predicated region
      $region9: #{rnn_decoder_forward.3} parent=5 // pred_check
        _
      $region10: #{rnn_decoder_forward.3} parent=5 // pred_check_branch
        %124 = sbr.rel (%p121) target = $region12
      $region11: #{rnn_decoder_forward.3} parent=5 // pred_region
        %s125 = ssub.s32 %s12, 1
        // Predicated region
        $region13: #{rnn_decoder_forward.3} parent=11 // pred_check
          %p126 = pneg %p33
        $region14: #{rnn_decoder_forward.3} parent=11 // pred_check_branch
          %128 = sbr.rel (%p126) target = $region16
        $region15: #{rnn_decoder_forward.3} parent=11 // pred_region
          _
        $region16: #{rnn_decoder_forward.3} parent=11 // pred_fallthru
          _
      $region12: #{rnn_decoder_forward.3} parent=5 // pred_fallthru
        _
      %p129 = scmp.lt.s32.totalorder %s12, 4
      // Predicated region
      $region17: #{rnn_decoder_forward.3} parent=5 // pred_check
        %p130 = pneg %p129
      $region18: #{rnn_decoder_forward.3} parent=5 // pred_check_branch
        %132 = sbr.rel (%p130) target = $region20
      $region19: #{rnn_decoder_forward.3} parent=5 // pred_region
        // Predicated region
        $region21: #{rnn_decoder_forward.3} parent=19 // pred_check
          %p133 = pneg %p53
        $region22: #{rnn_decoder_forward.3} parent=19 // pred_check_branch
          %135 = sbr.rel (%p133) target = $region24
        $region23: #{rnn_decoder_forward.3} parent=19 // pred_region
          %s136 = sand.u32 %s43, 1
          %s137 = sand.u32 %s43, 1
          %s138 = smul.addr %s137, 256
          %s139 = scalar_lea.vmem [#allocation2], %s138
          %s140 = smul.u32 4, %s12
          %s141 = smul.addr %s140, 4
          %s142 = scalar_lea.vmem %s1, %s141
          // Predicated region
          $region25: #{rnn_decoder_forward.3} parent=23 // pred_check
            _
          $region26: #{rnn_decoder_forward.3} parent=23 // pred_check_branch
            %144 = sbr.rel (0) target = $region28
          $region27: #{rnn_decoder_forward.3} parent=23 // pred_region
            // Predicated region
            $region29: #{rnn_decoder_forward.3} parent=27 // pred_check
              _
            $region30: #{rnn_decoder_forward.3} parent=27 // pred_check_branch
              %146 = sbr.rel (0) target = $region32
            $region31: #{rnn_decoder_forward.3} parent=27 // pred_region
              loop: start=0, step=1, limit=1
              $region33: #{rnn_decoder_forward.3} parent=31 // loop_pre_header
                _
              $region34: #{rnn_decoder_forward.3} parent=31 // loop_header
                %s148 = sphi 0, %s152
                %p149 = scmp.ge.s32.totalorder %s148, 1
                %s153 = sphi %s142, %s142
                %s154 = sphi %s139, %s139
              $region35: #{rnn_decoder_forward.3} parent=31 // loop_header_branch
                %151 = sbr.rel (%p149) target = $region39
              $region36: #{rnn_decoder_forward.3} parent=31 // loop_body
                %v155 = vld [vmem:[%s153] sm:$0xff]
                %156 = vst [vmem:[%s154] sm:$0xff] %v155
                %v157 = vld [vmem:[%s153 + $0x8] sm:$0xff]
                %158 = vst [vmem:[%s154 + $0x8] sm:$0xff] %v157
                %v159 = vld [vmem:[%s153 + $0x40] sm:$0xff]
                %160 = vst [vmem:[%s154 + $0x10] sm:$0xff] %v159
                %v161 = vld [vmem:[%s153 + $0x48] sm:$0xff]
                %162 = vst [vmem:[%s154 + $0x18] sm:$0xff] %v161
                %v163 = vld [vmem:[%s153 + $0x80] sm:$0xff]
                %164 = vst [vmem:[%s154 + $0x20] sm:$0xff] %v163
                %v165 = vld [vmem:[%s153 + $0x88] sm:$0xff]
                %166 = vst [vmem:[%s154 + $0x28] sm:$0xff] %v165
                %v167 = vld [vmem:[%s153 + $0xc0] sm:$0xff]
                %168 = vst [vmem:[%s154 + $0x30] sm:$0xff] %v167
                %v169 = vld [vmem:[%s153 + $0xc8] sm:$0xff]
                %170 = vst [vmem:[%s154 + $0x38] sm:$0xff] %v169
                %v171 = vld [vmem:[%s153 + $0x100] sm:$0xff]
                %172 = vst [vmem:[%s154 + $0x40] sm:$0xff] %v171
                %v173 = vld [vmem:[%s153 + $0x108] sm:$0xff]
                %174 = vst [vmem:[%s154 + $0x48] sm:$0xff] %v173
                %v175 = vld [vmem:[%s153 + $0x140] sm:$0xff]
                %176 = vst [vmem:[%s154 + $0x50] sm:$0xff] %v175
                %v177 = vld [vmem:[%s153 + $0x148] sm:$0xff]
                %178 = vst [vmem:[%s154 + $0x58] sm:$0xff] %v177
                %v179 = vld [vmem:[%s153 + $0x180] sm:$0xff]
                %180 = vst [vmem:[%s154 + $0x60] sm:$0xff] %v179
                %v181 = vld [vmem:[%s153 + $0x188] sm:$0xff]
                %182 = vst [vmem:[%s154 + $0x68] sm:$0xff] %v181
                %v183 = vld [vmem:[%s153 + $0x1c0] sm:$0xff]
                %184 = vst [vmem:[%s154 + $0x70] sm:$0xff] %v183
                %v185 = vld [vmem:[%s153 + $0x1c8] sm:$0xff]
                %186 = vst [vmem:[%s154 + $0x78] sm:$0xff] %v185
                %v187 = vld [vmem:[%s153 + $0x200] sm:$0xff]
                %188 = vst [vmem:[%s154 + $0x80] sm:$0xff] %v187
                %v189 = vld [vmem:[%s153 + $0x208] sm:$0xff]
                %190 = vst [vmem:[%s154 + $0x88] sm:$0xff] %v189
                %v191 = vld [vmem:[%s153 + $0x240] sm:$0xff]
                %192 = vst [vmem:[%s154 + $0x90] sm:$0xff] %v191
                %v193 = vld [vmem:[%s153 + $0x248] sm:$0xff]
                %194 = vst [vmem:[%s154 + $0x98] sm:$0xff] %v193
                %v195 = vld [vmem:[%s153 + $0x280] sm:$0xff]
                %196 = vst [vmem:[%s154 + $0xa0] sm:$0xff] %v195
                %v197 = vld [vmem:[%s153 + $0x288] sm:$0xff]
                %198 = vst [vmem:[%s154 + $0xa8] sm:$0xff] %v197
                %v199 = vld [vmem:[%s153 + $0x2c0] sm:$0xff]
                %200 = vst [vmem:[%s154 + $0xb0] sm:$0xff] %v199
                %v201 = vld [vmem:[%s153 + $0x2c8] sm:$0xff]
                %202 = vst [vmem:[%s154 + $0xb8] sm:$0xff] %v201
                %v203 = vld [vmem:[%s153 + $0x300] sm:$0xff]
                %204 = vst [vmem:[%s154 + $0xc0] sm:$0xff] %v203
                %v205 = vld [vmem:[%s153 + $0x308] sm:$0xff]
                %206 = vst [vmem:[%s154 + $0xc8] sm:$0xff] %v205
                %v207 = vld [vmem:[%s153 + $0x340] sm:$0xff]
                %208 = vst [vmem:[%s154 + $0xd0] sm:$0xff] %v207
                %v209 = vld [vmem:[%s153 + $0x348] sm:$0xff]
                %210 = vst [vmem:[%s154 + $0xd8] sm:$0xff] %v209
                %v211 = vld [vmem:[%s153 + $0x380] sm:$0xff]
                %212 = vst [vmem:[%s154 + $0xe0] sm:$0xff] %v211
                %v213 = vld [vmem:[%s153 + $0x388] sm:$0xff]
                %214 = vst [vmem:[%s154 + $0xe8] sm:$0xff] %v213
                %v215 = vld [vmem:[%s153 + $0x3c0] sm:$0xff]
                %216 = vst [vmem:[%s154 + $0xf0] sm:$0xff] %v215
                %v217 = vld [vmem:[%s153 + $0x3c8] sm:$0xff]
                %218 = vst [vmem:[%s154 + $0xf8] sm:$0xff] %v217
              $region37: #{rnn_decoder_forward.3} parent=31 // loop_footer
                %s152 = sadd.s32 1, %s148
              $region38: #{rnn_decoder_forward.3} parent=31 // loop_footer_branch
                %147 = sbr.rel target = $region34
              $region39: #{rnn_decoder_forward.3} parent=31 // loop_exit
                _
            $region32: #{rnn_decoder_forward.3} parent=27 // pred_fallthru
              _
            // Predicated region
            $region40: #{rnn_decoder_forward.3} parent=27 // pred_check
              _
            $region41: #{rnn_decoder_forward.3} parent=27 // pred_check_branch
              %220 = sbr.rel target = $region43
            $region42: #{rnn_decoder_forward.3} parent=27 // pred_region
              _
            $region43: #{rnn_decoder_forward.3} parent=27 // pred_fallthru
              _
          $region28: #{rnn_decoder_forward.3} parent=23 // pred_fallthru
            _
          %221 = vnop
        $region24: #{rnn_decoder_forward.3} parent=19 // pred_fallthru
          _
        // Predicated region
        $region44: #{rnn_decoder_forward.3} parent=19 // pred_check
          %p222 = pneg %p79
        $region45: #{rnn_decoder_forward.3} parent=19 // pred_check_branch
          %224 = sbr.rel (%p222) target = $region47
        $region46: #{rnn_decoder_forward.3} parent=19 // pred_region
          %s225 = smul.u32 4, %s12
          %p226 = scmp.lt.s32.totalorder %s225, 15
          %s227 = scalar_select %p226, %s225, 15
          %s228 = scalar_lea.vmem %s2, %s227
          %s229 = smul.u32 4, %s12
        $region47: #{rnn_decoder_forward.3} parent=19 // pred_fallthru
          _
      $region20: #{rnn_decoder_forward.3} parent=5 // pred_fallthru
        _
      %p230 = scmp.le.s32.totalorder 1, %s12
      %p231 = scmp.lt.s32.totalorder %s12, 5
      %p232 = pnand %p230, %p231
      %p233 = pneg %p232
      // Predicated region
      $region48: #{rnn_decoder_forward.3} parent=5 // pred_check
        _
      $region49: #{rnn_decoder_forward.3} parent=5 // pred_check_branch
        %235 = sbr.rel (%p232) target = $region51
      $region50: #{rnn_decoder_forward.3} parent=5 // pred_region
        %s236 = ssub.s32 %s12, 1
        %s237 = sand.u32 %s46, 1
        %s238 = sand.u32 %s46, 1
        %s239 = smul.addr %s238, 256
        %s240 = scalar_lea.vmem [#allocation2], %s239
        // Predicated region
        $region52: #{rnn_decoder_forward.3} parent=50 // pred_check
          %p241 = pneg %p59
        $region53: #{rnn_decoder_forward.3} parent=50 // pred_check_branch
          %243 = sbr.rel (%p241) target = $region55
        $region54: #{rnn_decoder_forward.3} parent=50 // pred_region
          _
        $region55: #{rnn_decoder_forward.3} parent=50 // pred_fallthru
          _
        %p244 = pneg %p33
        %p245 = pneg %p30
        %s246 = sand.u32 %s46, 1
        %s247 = sand.u32 %s46, 1
        %s248 = smul.addr %s247, 256
        %s249 = scalar_lea.vmem [#allocation2], %s248
        %p250 = pneg %p59
        %p251 = pneg %p56
        %s252 = smul.u32 4, %s17
        %p253 = scmp.lt.s32.totalorder %s252, 15
        %s254 = scalar_select %p253, %s252, 15
        %s255 = scalar_lea.vmem %s2, %s254
        %p256 = pneg %p85
        %p257 = pneg %p82
        %p258 = pneg %p111
        %p259 = pneg %p108
        %s260 = sand.u32 %s98, 1
        %s261 = scalar_lea.sflag [#allocation4], %s260
        %s262 = sand.u32 %s98, 1
        %s263 = smul.addr %s262, 32
        %s264 = scalar_lea.vmem [#allocation3], %s263
        %s265 = smul.u32 4, %s17
        %s266 = smul.u32 4, %s17
        %p267 = scmp.lt.s32.totalorder %s266, 15
        %s268 = scalar_select %p267, %s266, 15
        %s269 = scalar_lea.vmem %s2, %s268
        %s270 = smul.u32 4, %s17
        %s271 = smul.u32 4, %s17
        %v273 = vld [vmem:[%s0] sm:$0xf]
        %v274 = vld [vmem:[%s240] sm:$0xff]
        %v275 = vld [vmem:[%s240 + $0x8] sm:$0xff]
        %v276 = vld [vmem:[%s240 + $0x10] sm:$0xff]
        %v277 = vld [vmem:[%s240 + $0x18] sm:$0xff]
        %v278 = vld [vmem:[%s240 + $0x20] sm:$0xff]
        %v279 = vld [vmem:[%s240 + $0x28] sm:$0xff]
        %v280 = vld [vmem:[%s240 + $0x30] sm:$0xff]
        %v281 = vld [vmem:[%s240 + $0x38] sm:$0xff]
        %v282 = vld [vmem:[%s240 + $0x40] sm:$0xff]
        %v283 = vld [vmem:[%s240 + $0x48] sm:$0xff]
        %v284 = vld [vmem:[%s240 + $0x50] sm:$0xff]
        %v285 = vld [vmem:[%s240 + $0x58] sm:$0xff]
        %v286 = vld [vmem:[%s240 + $0x60] sm:$0xff]
        %v287 = vld [vmem:[%s240 + $0x68] sm:$0xff]
        %v288 = vld [vmem:[%s240 + $0x70] sm:$0xff]
        %v289 = vld [vmem:[%s240 + $0x78] sm:$0xff]
        %v290 = vld [vmem:[%s240 + $0x80] sm:$0xff]
        %v291 = vld [vmem:[%s240 + $0x88] sm:$0xff]
        %v292 = vld [vmem:[%s240 + $0x90] sm:$0xff]
        %v293 = vld [vmem:[%s240 + $0x98] sm:$0xff]
        %v294 = vld [vmem:[%s240 + $0xa0] sm:$0xff]
        %v295 = vld [vmem:[%s240 + $0xa8] sm:$0xff]
        %v296 = vld [vmem:[%s240 + $0xb0] sm:$0xff]
        %v297 = vld [vmem:[%s240 + $0xb8] sm:$0xff]
        %v298 = vld [vmem:[%s240 + $0xc0] sm:$0xff]
        %v299 = vld [vmem:[%s240 + $0xc8] sm:$0xff]
        %v300 = vld [vmem:[%s240 + $0xd0] sm:$0xff]
        %v301 = vld [vmem:[%s240 + $0xd8] sm:$0xff]
        %v302 = vld [vmem:[%s240 + $0xe0] sm:$0xff]
        %v303 = vld [vmem:[%s240 + $0xe8] sm:$0xff]
        %v304 = vld [vmem:[%s240 + $0xf0] sm:$0xff]
        %v305 = vld [vmem:[%s240 + $0xf8] sm:$0xff]
        %v306 = vld [vmem:[%s269] sm:$0xf]
        %v308 = vlaneseq
        %v309 = vshrl.u32 %v308, 7
        %v310 = vsub.s32 0, %v309
        %v311 = vrot.slane %v306, %v310
        %v312 = vlaneseq
        %v313 = vshrl.u32 %v312, 7
        %v314 = vsub.s32 1, %v313
        %v315 = vrot.slane %v306, %v314
        %v316 = vlaneseq
        %v317 = vshrl.u32 %v316, 7
        %v318 = vsub.s32 2, %v317
        %v319 = vrot.slane %v306, %v318
        %v320 = vlaneseq
        %v321 = vshrl.u32 %v320, 7
        %v322 = vsub.s32 3, %v321
        %v323 = vrot.slane %v306, %v322
        %v360 = vunpack.c.l.b16 %v274
        %v361 = vunpack.c.h.b16 %v274
        %v362 = vunpack.c.l.b16 %v275
        %v363 = vunpack.c.h.b16 %v275
        %v364 = vunpack.c.l.b16 %v276
        %v365 = vunpack.c.h.b16 %v276
        %v366 = vunpack.c.l.b16 %v277
        %v367 = vunpack.c.h.b16 %v277
        %v368 = vunpack.c.l.b16 %v278
        %v369 = vunpack.c.h.b16 %v278
        %v370 = vunpack.c.l.b16 %v279
        %v371 = vunpack.c.h.b16 %v279
        %v372 = vunpack.c.l.b16 %v280
        %v373 = vunpack.c.h.b16 %v280
        %v374 = vunpack.c.l.b16 %v281
        %v375 = vunpack.c.h.b16 %v281
        %v376 = vunpack.c.l.b16 %v282
        %v377 = vunpack.c.h.b16 %v282
        %v378 = vunpack.c.l.b16 %v283
        %v379 = vunpack.c.h.b16 %v283
        %v380 = vunpack.c.l.b16 %v284
        %v381 = vunpack.c.h.b16 %v284
        %v382 = vunpack.c.l.b16 %v285
        %v383 = vunpack.c.h.b16 %v285
        %v384 = vunpack.c.l.b16 %v286
        %v385 = vunpack.c.h.b16 %v286
        %v386 = vunpack.c.l.b16 %v287
        %v387 = vunpack.c.h.b16 %v287
        %v388 = vunpack.c.l.b16 %v288
        %v389 = vunpack.c.h.b16 %v288
        %v390 = vunpack.c.l.b16 %v289
        %v391 = vunpack.c.h.b16 %v289
        %v392 = vunpack.c.l.b16 %v290
        %v393 = vunpack.c.h.b16 %v290
        %v394 = vunpack.c.l.b16 %v291
        %v395 = vunpack.c.h.b16 %v291
        %v396 = vunpack.c.l.b16 %v292
        %v397 = vunpack.c.h.b16 %v292
        %v398 = vunpack.c.l.b16 %v293
        %v399 = vunpack.c.h.b16 %v293
        %v400 = vunpack.c.l.b16 %v294
        %v401 = vunpack.c.h.b16 %v294
        %v402 = vunpack.c.l.b16 %v295
        %v403 = vunpack.c.h.b16 %v295
        %v404 = vunpack.c.l.b16 %v296
        %v405 = vunpack.c.h.b16 %v296
        %v406 = vunpack.c.l.b16 %v297
        %v407 = vunpack.c.h.b16 %v297
        %v408 = vunpack.c.l.b16 %v298
        %v409 = vunpack.c.h.b16 %v298
        %v410 = vunpack.c.l.b16 %v299
        %v411 = vunpack.c.h.b16 %v299
        %v412 = vunpack.c.l.b16 %v300
        %v413 = vunpack.c.h.b16 %v300
        %v414 = vunpack.c.l.b16 %v301
        %v415 = vunpack.c.h.b16 %v301
        %v416 = vunpack.c.l.b16 %v302
        %v417 = vunpack.c.h.b16 %v302
        %v418 = vunpack.c.l.b16 %v303
        %v419 = vunpack.c.h.b16 %v303
        %v420 = vunpack.c.l.b16 %v304
        %v421 = vunpack.c.h.b16 %v304
        %v422 = vunpack.c.l.b16 %v305
        %v423 = vunpack.c.h.b16 %v305
        %v424 = vpack.c.b16 %v364, %v360
        %v425 = vpack.c.b16 %v365, %v361
        %v426 = vpack.c.b16 %v366, %v362
        %v427 = vpack.c.b16 %v367, %v363
        %v428 = vpack.c.b16 %v372, %v368
        %v429 = vpack.c.b16 %v373, %v369
        %v430 = vpack.c.b16 %v374, %v370
        %v431 = vpack.c.b16 %v375, %v371
        %v432 = vpack.c.b16 %v380, %v376
        %v433 = vpack.c.b16 %v381, %v377
        %v434 = vpack.c.b16 %v382, %v378
        %v435 = vpack.c.b16 %v383, %v379
        %v436 = vpack.c.b16 %v388, %v384
        %v437 = vpack.c.b16 %v389, %v385
        %v438 = vpack.c.b16 %v390, %v386
        %v439 = vpack.c.b16 %v391, %v387
        %v440 = vpack.c.b16 %v396, %v392
        %v441 = vpack.c.b16 %v397, %v393
        %v442 = vpack.c.b16 %v398, %v394
        %v443 = vpack.c.b16 %v399, %v395
        %v444 = vpack.c.b16 %v404, %v400
        %v445 = vpack.c.b16 %v405, %v401
        %v446 = vpack.c.b16 %v406, %v402
        %v447 = vpack.c.b16 %v407, %v403
        %v448 = vpack.c.b16 %v412, %v408
        %v449 = vpack.c.b16 %v413, %v409
        %v450 = vpack.c.b16 %v414, %v410
        %v451 = vpack.c.b16 %v415, %v411
        %v452 = vpack.c.b16 %v420, %v416
        %v453 = vpack.c.b16 %v421, %v417
        %v454 = vpack.c.b16 %v422, %v418
        %v455 = vpack.c.b16 %v423, %v419
        %488 = vmatprep.subr.bf16.mxu0 %v425
        %489 = vmatpush1.bf16.msra.mxu0 %v424
        %490 = vmatprep.subr.bf16.mxu0 %v429
        %491 = vmatpush1.bf16.msra.mxu0 %v428
        %492 = vmatprep.subr.bf16.mxu0 %v433
        %493 = vmatpush1.bf16.msra.mxu0 %v432
        %494 = vmatprep.subr.bf16.mxu0 %v437
        %495 = vmatpush1.bf16.msra.mxu0 %v436
        %496 = vmatprep.subr.bf16.mxu0 %v441
        %497 = vmatpush1.bf16.msra.mxu0 %v440
        %498 = vmatprep.subr.bf16.mxu0 %v445
        %499 = vmatpush1.bf16.msra.mxu0 %v444
        %500 = vmatprep.subr.bf16.mxu0 %v449
        %501 = vmatpush1.bf16.msra.mxu0 %v448
        %502 = vmatprep.subr.bf16.mxu0 %v453
        %503 = vmatpush1.bf16.msra.mxu0 %v452
        %504 = vmatprep.subr.bf16.mxu0 0
        %505 = vmatpush1.bf16.msra.mxu0 0
        %506 = vmatprep.subr.bf16.mxu0 0
        %507 = vmatpush1.bf16.msra.mxu0 0
        %508 = vmatprep.subr.bf16.mxu0 0
        %509 = vmatpush1.bf16.msra.mxu0 0
        %510 = vmatprep.subr.bf16.mxu0 0
        %511 = vmatpush1.bf16.msra.mxu0 0
        %512 = vmatprep.subr.bf16.mxu0 0
        %513 = vmatpush1.bf16.msra.mxu0 0
        %514 = vmatprep.subr.bf16.mxu0 0
        %515 = vmatpush1.bf16.msra.mxu0 0
        %516 = vmatprep.subr.bf16.mxu0 0
        %517 = vmatpush1.bf16.msra.mxu0 0
        %518 = vmatprep.subr.bf16.mxu0 0
        %519 = vmatpush1.bf16.msra.mxu0 0
        %520 = vmatprep.mubr.bf16.mxu0 0
        %521 = vmatmul.mubr.bf16.gmra.mrb[0].mxu0 %v273
        %v522 = vpop.f32.mrb[0].mxu0
        %v523 = vadd.f32 %v311, %v522
        %v524 = vpop.f32.mrb[0].mxu0
        %v525 = vadd.f32 %v315, %v524
        %v526 = vpop.f32.mrb[0].mxu0
        %v527 = vpop.f32.mrb[0].mxu0
        %528 = vdwg.mxu0
        %529 = vmatprep.subr.bf16.mxu0 %v427
        %530 = vmatpush1.bf16.msra.mxu0 %v426
        %531 = vmatprep.subr.bf16.mxu0 %v431
        %532 = vmatpush1.bf16.msra.mxu0 %v430
        %533 = vmatprep.subr.bf16.mxu0 %v435
        %534 = vmatpush1.bf16.msra.mxu0 %v434
        %535 = vmatprep.subr.bf16.mxu0 %v439
        %536 = vmatpush1.bf16.msra.mxu0 %v438
        %537 = vmatprep.subr.bf16.mxu0 %v443
        %538 = vmatpush1.bf16.msra.mxu0 %v442
        %539 = vmatprep.subr.bf16.mxu0 %v447
        %540 = vmatpush1.bf16.msra.mxu0 %v446
        %541 = vmatprep.subr.bf16.mxu0 %v451
        %542 = vmatpush1.bf16.msra.mxu0 %v450
        %543 = vmatprep.subr.bf16.mxu0 %v455
        %544 = vmatpush1.bf16.msra.mxu0 %v454
        %545 = vmatprep.subr.bf16.mxu0 0
        %546 = vmatpush1.bf16.msra.mxu0 0
        %547 = vmatprep.subr.bf16.mxu0 0
        %548 = vmatpush1.bf16.msra.mxu0 0
        %549 = vmatprep.subr.bf16.mxu0 0
        %550 = vmatpush1.bf16.msra.mxu0 0
        %551 = vmatprep.subr.bf16.mxu0 0
        %552 = vmatpush1.bf16.msra.mxu0 0
        %553 = vmatprep.subr.bf16.mxu0 0
        %554 = vmatpush1.bf16.msra.mxu0 0
        %555 = vmatprep.subr.bf16.mxu0 0
        %556 = vmatpush1.bf16.msra.mxu0 0
        %557 = vmatprep.subr.bf16.mxu0 0
        %558 = vmatpush1.bf16.msra.mxu0 0
        %559 = vmatprep.subr.bf16.mxu0 0
        %560 = vmatpush1.bf16.msra.mxu0 0
        %561 = vmatprep.mubr.bf16.mxu0 0
        %562 = vmatmul.mubr.bf16.gmra.mrb[0].mxu0 %v273
        %v563 = vpop.f32.mrb[0].mxu0
        %v564 = vadd.f32 %v319, %v563
        %v565 = vpop.f32.mrb[0].mxu0
        %v566 = vadd.f32 %v323, %v565
        %v567 = vpop.f32.mrb[0].mxu0
        %v568 = vpop.f32.mrb[0].mxu0
        %569 = vdwg.mxu0
        %570 = vst [vmem:[%s264] sm:$0xff] %v523
        %571 = vst [vmem:[%s264 + $0x8] sm:$0xff] %v525
        %572 = vst [vmem:[%s264 + $0x10] sm:$0xff] %v564
        %573 = vst [vmem:[%s264 + $0x18] sm:$0xff] %v566
        %s574 = sand.u32 %s98, 1
        %s575 = scalar_lea.sflag [#allocation4], %s574
        %s576 = sand.u32 %s98, 1
        %s577 = smul.addr %s576, 32
        %s578 = scalar_lea.vmem [#allocation3], %s577
        // Predicated region
        $region56: #{rnn_decoder_forward.3} parent=50 // pred_check
          %p579 = pneg %p108
        $region57: #{rnn_decoder_forward.3} parent=50 // pred_check_branch
          %581 = sbr.rel (%p579) target = $region59
        $region58: #{rnn_decoder_forward.3} parent=50 // pred_region
          %s582 = smul.u32 4, %s17
          %s584 = ssub.s32 512, 512
          %585 = vsyncadd %s575, %s584
          %s586 = smul.addr %s582, 128
          %s587 = scalar_lea.hbm %s3, %s586
          %s589 = sshll.u32 %s578, 4
          %s590 = int_to_ptr.vmem [resolvable:$true] %s589
          %592 = dma.vmem_to_hbm [thread:$0]  %s590, 512, %s587, %s575
        $region59: #{rnn_decoder_forward.3} parent=50 // pred_fallthru
          _
      $region51: #{rnn_decoder_forward.3} parent=5 // pred_fallthru
        _
      %p593 = scmp.le.s32.totalorder 2, %s12
      // Predicated region
      $region60: #{rnn_decoder_forward.3} parent=5 // pred_check
        %p594 = pneg %p593
      $region61: #{rnn_decoder_forward.3} parent=5 // pred_check_branch
        %596 = sbr.rel (%p594) target = $region63
      $region62: #{rnn_decoder_forward.3} parent=5 // pred_region
        %s597 = ssub.s32 %s12, 2
        // Predicated region
        $region64: #{rnn_decoder_forward.3} parent=62 // pred_check
          %p598 = pneg %p114
        $region65: #{rnn_decoder_forward.3} parent=62 // pred_check_branch
          %600 = sbr.rel (%p598) target = $region67
        $region66: #{rnn_decoder_forward.3} parent=62 // pred_region
          %s601 = sand.u32 %s99, 1
          %s602 = scalar_lea.sflag [#allocation4], %s601
          %s603 = sand.u32 %s99, 1
          %s604 = smul.addr %s603, 32
          %s605 = scalar_lea.vmem [#allocation3], %s604
          %606 = dma.done %s602, 512
        $region67: #{rnn_decoder_forward.3} parent=62 // pred_fallthru
          _
      $region63: #{rnn_decoder_forward.3} parent=5 // pred_fallthru
        _
    $region6: #{rnn_decoder_forward.3} parent=1 // loop_footer
      %s16 = sadd.s32 1, %s12
    $region7: #{rnn_decoder_forward.3} parent=1 // loop_footer_branch
      %11 = sbr.rel target = $region3
    $region8: #{rnn_decoder_forward.3} parent=1 // loop_exit
      _
    %607 = vsyncpa [#allocation4], 1
    %s608 = scalar_lea.sflag [#allocation4], 1
    %609 = vsyncpa %s608, 1

// kernel: rnn_decoder_forward.2
$region0: #{rnn_decoder_forward.2}
  #allocation0 [shape = 'u32[]', space=smem, size = 0x4, offset = 0x4, fixed_abs, tag = 'smem constant byte address 0x4 - core index']
  #allocation1 [shape = 'u32[144,128]{1,0:T(1,128)}', space=vmem, size = 0x12000, scoped, tag = 'internal scratch']
  #allocation2 [shape = 'f32[1,1]{1,0:T(1,128)S(1)}', space=vmem, size = 0x200, scoped, tag = 'scoped memory for rnn_decoder_forward.2']
  %s0 = inlined_call_operand.vmem [shape: bf16[8,32], index: 0, kind: input, shape index: {}]
  %s1 = inlined_call_operand.vmem [shape: f32[8,128], index: 1, kind: input, shape index: {}]
  %s2 = inlined_call_operand.vmem [shape: bf16[8,16,128], index: 2, kind: input, shape index: {}]
  %s3 = inlined_call_operand.vmem [shape: f32[8,16,128], index: 3, kind: input, shape index: {}]
  %s4 = inlined_call_operand.vmem [shape: bf16[128,512], index: 4, kind: input, shape index: {}]
  %s5 = inlined_call_operand.vmem [shape: f32[1,512], index: 5, kind: input, shape index: {}]
  %s6 = inlined_call_operand.vmem [shape: f32[1,128], index: 6, kind: input, shape index: {}]
  %s7 = inlined_call_operand.<no memory space> [shape: f32[1,1], index: 7, kind: input, shape index: {}]
  %s8 = inlined_call_operand.vmem [shape: bf16[32,384], index: 8, kind: input, shape index: {}]
  %s9 = inlined_call_operand.vmem [shape: bf16[128,384], index: 9, kind: input, shape index: {}]
  %s10 = inlined_call_operand.vmem [shape: f32[1,384], index: 10, kind: input, shape index: {}]
  %s11 = inlined_call_operand.hbm [shape: f32[8,16], index: 11, kind: output, shape index: {0}]
  %s12 = inlined_call_operand.hbm [shape: f32[8,128], index: 12, kind: output, shape index: {1}]
  %s13 = inlined_call_operand.vmem [shape: bf16[8,128], index: 13, kind: output, shape index: {2}]
  %14 = xla_tuple %s11, %s12, %s13
  %s15 = sld [smem:[#allocation0]]
  $region70: #{rnn_decoder_forward.2} parent=0
    _
  %s17 = ssub.s32 1, %s15
  %s18 = scalar_select 0, %s17, %s15
  %v19 = vstv %s7
  %20 = vst [vmem:[#allocation2] sm:$0x1] %v19
  $region1: #{rnn_decoder_forward.2} parent=0
    #allocation3 [shape = 'u8[4096]{0}', space=vmem, size = 0x1000, scoped, tag = 'output window, operand 0, single buffered']
    #allocation4 [shape = 's32[1]{0}', space=sflag, size = 0x4, scoped, tag = 'scoped memory for rnn_decoder_forward.2']
    #allocation5 [shape = 'u8[4096]{0}', space=vmem, size = 0x1000, scoped, tag = 'output window, operand 1, single buffered']
    #allocation6 [shape = 's32[1]{0}', space=sflag, size = 0x4, scoped, tag = 'scoped memory for rnn_decoder_forward.2']
    %21 = vsyncpa [#allocation4], 0
    %22 = vsyncpa [#allocation6], 0
    // Predicated region
    $region2: #{rnn_decoder_forward.2} parent=1 // pred_check
      _
    $region3: #{rnn_decoder_forward.2} parent=1 // pred_check_branch
      %24 = sbr.rel (0) target = $region5
    $region4: #{rnn_decoder_forward.2} parent=1 // pred_region
      _
    $region5: #{rnn_decoder_forward.2} parent=1 // pred_fallthru
      _
    // Predicated region
    $region6: #{rnn_decoder_forward.2} parent=1 // pred_check
      _
    $region7: #{rnn_decoder_forward.2} parent=1 // pred_check_branch
      %26 = sbr.rel (0) target = $region9
    $region8: #{rnn_decoder_forward.2} parent=1 // pred_region
      _
    $region9: #{rnn_decoder_forward.2} parent=1 // pred_fallthru
      _
    // Predicated region
    $region10: #{rnn_decoder_forward.2} parent=1 // pred_check
      _
    $region11: #{rnn_decoder_forward.2} parent=1 // pred_check_branch
      %28 = sbr.rel (0) target = $region13
    $region12: #{rnn_decoder_forward.2} parent=1 // pred_region
      _
    $region13: #{rnn_decoder_forward.2} parent=1 // pred_fallthru
      _
    // Predicated region
    $region14: #{rnn_decoder_forward.2} parent=1 // pred_check
      _
    $region15: #{rnn_decoder_forward.2} parent=1 // pred_check_branch
      %30 = sbr.rel (0) target = $region17
    $region16: #{rnn_decoder_forward.2} parent=1 // pred_region
      _
    $region17: #{rnn_decoder_forward.2} parent=1 // pred_fallthru
      _
    // Predicated region
    $region18: #{rnn_decoder_forward.2} parent=1 // pred_check
      _
    $region19: #{rnn_decoder_forward.2} parent=1 // pred_check_branch
      %32 = sbr.rel (0) target = $region21
    $region20: #{rnn_decoder_forward.2} parent=1 // pred_region
      _
    $region21: #{rnn_decoder_forward.2} parent=1 // pred_fallthru
      _
    // Predicated region
    $region22: #{rnn_decoder_forward.2} parent=1 // pred_check
      _
    $region23: #{rnn_decoder_forward.2} parent=1 // pred_check_branch
      %34 = sbr.rel (0) target = $region25
    $region24: #{rnn_decoder_forward.2} parent=1 // pred_region
      _
    $region25: #{rnn_decoder_forward.2} parent=1 // pred_fallthru
      _
    // Predicated region
    $region26: #{rnn_decoder_forward.2} parent=1 // pred_check
      _
    $region27: #{rnn_decoder_forward.2} parent=1 // pred_check_branch
      %36 = sbr.rel (0) target = $region29
    $region28: #{rnn_decoder_forward.2} parent=1 // pred_region
      _
    $region29: #{rnn_decoder_forward.2} parent=1 // pred_fallthru
      _
    // Predicated region
    $region30: #{rnn_decoder_forward.2} parent=1 // pred_check
      _
    $region31: #{rnn_decoder_forward.2} parent=1 // pred_check_branch
      %38 = sbr.rel (0) target = $region33
    $region32: #{rnn_decoder_forward.2} parent=1 // pred_region
      _
    $region33: #{rnn_decoder_forward.2} parent=1 // pred_fallthru
      _
    // Predicated region
    $region34: #{rnn_decoder_forward.2} parent=1 // pred_check
      _
    $region35: #{rnn_decoder_forward.2} parent=1 // pred_check_branch
      %40 = sbr.rel (0) target = $region37
    $region36: #{rnn_decoder_forward.2} parent=1 // pred_region
      _
    $region37: #{rnn_decoder_forward.2} parent=1 // pred_fallthru
      _
    // Predicated region
    $region38: #{rnn_decoder_forward.2} parent=1 // pred_check
      _
    $region39: #{rnn_decoder_forward.2} parent=1 // pred_check_branch
      %42 = sbr.rel (0) target = $region41
    $region40: #{rnn_decoder_forward.2} parent=1 // pred_region
      _
    $region41: #{rnn_decoder_forward.2} parent=1 // pred_fallthru
      _
    // Predicated region
    $region42: #{rnn_decoder_forward.2} parent=1 // pred_check
      _
    $region43: #{rnn_decoder_forward.2} parent=1 // pred_check_branch
      %44 = sbr.rel (0) target = $region45
    $region44: #{rnn_decoder_forward.2} parent=1 // pred_region
      _
    $region45: #{rnn_decoder_forward.2} parent=1 // pred_fallthru
      _
    %v46 = vld [vmem:[%s1] sm:$0xff]
    %v47 = vpack.c.bf16 %v46, %v46
    %v48 = vld [vmem:[%s4] sm:$0xff]
    %v49 = vld [vmem:[%s4 + $0x8] sm:$0xff]
    %v50 = vld [vmem:[%s4 + $0x10] sm:$0xff]
    %v51 = vld [vmem:[%s4 + $0x18] sm:$0xff]
    %v52 = vld [vmem:[%s4 + $0x20] sm:$0xff]
    %v53 = vld [vmem:[%s4 + $0x28] sm:$0xff]
    %v54 = vld [vmem:[%s4 + $0x30] sm:$0xff]
    %v55 = vld [vmem:[%s4 + $0x38] sm:$0xff]
    %v56 = vld [vmem:[%s4 + $0x40] sm:$0xff]
    %v57 = vld [vmem:[%s4 + $0x48] sm:$0xff]
    %v58 = vld [vmem:[%s4 + $0x50] sm:$0xff]
    %v59 = vld [vmem:[%s4 + $0x58] sm:$0xff]
    %v60 = vld [vmem:[%s4 + $0x60] sm:$0xff]
    %v61 = vld [vmem:[%s4 + $0x68] sm:$0xff]
    %v62 = vld [vmem:[%s4 + $0x70] sm:$0xff]
    %v63 = vld [vmem:[%s4 + $0x78] sm:$0xff]
    %v64 = vld [vmem:[%s4 + $0x80] sm:$0xff]
    %v65 = vld [vmem:[%s4 + $0x88] sm:$0xff]
    %v66 = vld [vmem:[%s4 + $0x90] sm:$0xff]
    %v67 = vld [vmem:[%s4 + $0x98] sm:$0xff]
    %v68 = vld [vmem:[%s4 + $0xa0] sm:$0xff]
    %v69 = vld [vmem:[%s4 + $0xa8] sm:$0xff]
    %v70 = vld [vmem:[%s4 + $0xb0] sm:$0xff]
    %v71 = vld [vmem:[%s4 + $0xb8] sm:$0xff]
    %v72 = vld [vmem:[%s4 + $0xc0] sm:$0xff]
    %v73 = vld [vmem:[%s4 + $0xc8] sm:$0xff]
    %v74 = vld [vmem:[%s4 + $0xd0] sm:$0xff]
    %v75 = vld [vmem:[%s4 + $0xd8] sm:$0xff]
    %v76 = vld [vmem:[%s4 + $0xe0] sm:$0xff]
    %v77 = vld [vmem:[%s4 + $0xe8] sm:$0xff]
    %v78 = vld [vmem:[%s4 + $0xf0] sm:$0xff]
    %v79 = vld [vmem:[%s4 + $0xf8] sm:$0xff]
    %v80 = vld [vmem:[%s5] sm:$0xf]
    %v82 = vlaneseq
    %v83 = vshrl.u32 %v82, 7
    %v84 = vsub.s32 0, %v83
    %v85 = vrot.slane %v80, %v84
    %v86 = vlaneseq
    %v87 = vshrl.u32 %v86, 7
    %v88 = vsub.s32 1, %v87
    %v89 = vrot.slane %v80, %v88
    %v90 = vlaneseq
    %v91 = vshrl.u32 %v90, 7
    %v92 = vsub.s32 2, %v91
    %v93 = vrot.slane %v80, %v92
    %v94 = vlaneseq
    %v95 = vshrl.u32 %v94, 7
    %v96 = vsub.s32 3, %v95
    %v97 = vrot.slane %v80, %v96
    %v134 = vunpack.c.l.b16 %v48
    %v135 = vunpack.c.h.b16 %v48
    %v136 = vunpack.c.l.b16 %v49
    %v137 = vunpack.c.h.b16 %v49
    %v138 = vunpack.c.l.b16 %v50
    %v139 = vunpack.c.h.b16 %v50
    %v140 = vunpack.c.l.b16 %v51
    %v141 = vunpack.c.h.b16 %v51
    %v142 = vunpack.c.l.b16 %v52
    %v143 = vunpack.c.h.b16 %v52
    %v144 = vunpack.c.l.b16 %v53
    %v145 = vunpack.c.h.b16 %v53
    %v146 = vunpack.c.l.b16 %v54
    %v147 = vunpack.c.h.b16 %v54
    %v148 = vunpack.c.l.b16 %v55
    %v149 = vunpack.c.h.b16 %v55
    %v150 = vunpack.c.l.b16 %v56
    %v151 = vunpack.c.h.b16 %v56
    %v152 = vunpack.c.l.b16 %v57
    %v153 = vunpack.c.h.b16 %v57
    %v154 = vunpack.c.l.b16 %v58
    %v155 = vunpack.c.h.b16 %v58
    %v156 = vunpack.c.l.b16 %v59
    %v157 = vunpack.c.h.b16 %v59
    %v158 = vunpack.c.l.b16 %v60
    %v159 = vunpack.c.h.b16 %v60
    %v160 = vunpack.c.l.b16 %v61
    %v161 = vunpack.c.h.b16 %v61
    %v162 = vunpack.c.l.b16 %v62
    %v163 = vunpack.c.h.b16 %v62
    %v164 = vunpack.c.l.b16 %v63
    %v165 = vunpack.c.h.b16 %v63
    %v166 = vunpack.c.l.b16 %v64
    %v167 = vunpack.c.h.b16 %v64
    %v168 = vunpack.c.l.b16 %v65
    %v169 = vunpack.c.h.b16 %v65
    %v170 = vunpack.c.l.b16 %v66
    %v171 = vunpack.c.h.b16 %v66
    %v172 = vunpack.c.l.b16 %v67
    %v173 = vunpack.c.h.b16 %v67
    %v174 = vunpack.c.l.b16 %v68
    %v175 = vunpack.c.h.b16 %v68
    %v176 = vunpack.c.l.b16 %v69
    %v177 = vunpack.c.h.b16 %v69
    %v178 = vunpack.c.l.b16 %v70
    %v179 = vunpack.c.h.b16 %v70
    %v180 = vunpack.c.l.b16 %v71
    %v181 = vunpack.c.h.b16 %v71
    %v182 = vunpack.c.l.b16 %v72
    %v183 = vunpack.c.h.b16 %v72
    %v184 = vunpack.c.l.b16 %v73
    %v185 = vunpack.c.h.b16 %v73
    %v186 = vunpack.c.l.b16 %v74
    %v187 = vunpack.c.h.b16 %v74
    %v188 = vunpack.c.l.b16 %v75
    %v189 = vunpack.c.h.b16 %v75
    %v190 = vunpack.c.l.b16 %v76
    %v191 = vunpack.c.h.b16 %v76
    %v192 = vunpack.c.l.b16 %v77
    %v193 = vunpack.c.h.b16 %v77
    %v194 = vunpack.c.l.b16 %v78
    %v195 = vunpack.c.h.b16 %v78
    %v196 = vunpack.c.l.b16 %v79
    %v197 = vunpack.c.h.b16 %v79
    %v198 = vpack.c.b16 %v138, %v134
    %v199 = vpack.c.b16 %v139, %v135
    %v200 = vpack.c.b16 %v140, %v136
    %v201 = vpack.c.b16 %v141, %v137
    %v202 = vpack.c.b16 %v146, %v142
    %v203 = vpack.c.b16 %v147, %v143
    %v204 = vpack.c.b16 %v148, %v144
    %v205 = vpack.c.b16 %v149, %v145
    %v206 = vpack.c.b16 %v154, %v150
    %v207 = vpack.c.b16 %v155, %v151
    %v208 = vpack.c.b16 %v156, %v152
    %v209 = vpack.c.b16 %v157, %v153
    %v210 = vpack.c.b16 %v162, %v158
    %v211 = vpack.c.b16 %v163, %v159
    %v212 = vpack.c.b16 %v164, %v160
    %v213 = vpack.c.b16 %v165, %v161
    %v214 = vpack.c.b16 %v170, %v166
    %v215 = vpack.c.b16 %v171, %v167
    %v216 = vpack.c.b16 %v172, %v168
    %v217 = vpack.c.b16 %v173, %v169
    %v218 = vpack.c.b16 %v178, %v174
    %v219 = vpack.c.b16 %v179, %v175
    %v220 = vpack.c.b16 %v180, %v176
    %v221 = vpack.c.b16 %v181, %v177
    %v222 = vpack.c.b16 %v186, %v182
    %v223 = vpack.c.b16 %v187, %v183
    %v224 = vpack.c.b16 %v188, %v184
    %v225 = vpack.c.b16 %v189, %v185
    %v226 = vpack.c.b16 %v194, %v190
    %v227 = vpack.c.b16 %v195, %v191
    %v228 = vpack.c.b16 %v196, %v192
    %v229 = vpack.c.b16 %v197, %v193
    %262 = vmatprep.subr.bf16.mxu0 %v199
    %263 = vmatpush1.bf16.msra.mxu0 %v198
    %264 = vmatprep.subr.bf16.mxu0 %v203
    %265 = vmatpush1.bf16.msra.mxu0 %v202
    %266 = vmatprep.subr.bf16.mxu0 %v207
    %267 = vmatpush1.bf16.msra.mxu0 %v206
    %268 = vmatprep.subr.bf16.mxu0 %v211
    %269 = vmatpush1.bf16.msra.mxu0 %v210
    %270 = vmatprep.subr.bf16.mxu0 %v215
    %271 = vmatpush1.bf16.msra.mxu0 %v214
    %272 = vmatprep.subr.bf16.mxu0 %v219
    %273 = vmatpush1.bf16.msra.mxu0 %v218
    %274 = vmatprep.subr.bf16.mxu0 %v223
    %275 = vmatpush1.bf16.msra.mxu0 %v222
    %276 = vmatprep.subr.bf16.mxu0 %v227
    %277 = vmatpush1.bf16.msra.mxu0 %v226
    %278 = vmatprep.subr.bf16.mxu0 0
    %279 = vmatpush1.bf16.msra.mxu0 0
    %280 = vmatprep.subr.bf16.mxu0 0
    %281 = vmatpush1.bf16.msra.mxu0 0
    %282 = vmatprep.subr.bf16.mxu0 0
    %283 = vmatpush1.bf16.msra.mxu0 0
    %284 = vmatprep.subr.bf16.mxu0 0
    %285 = vmatpush1.bf16.msra.mxu0 0
    %286 = vmatprep.subr.bf16.mxu0 0
    %287 = vmatpush1.bf16.msra.mxu0 0
    %288 = vmatprep.subr.bf16.mxu0 0
    %289 = vmatpush1.bf16.msra.mxu0 0
    %290 = vmatprep.subr.bf16.mxu0 0
    %291 = vmatpush1.bf16.msra.mxu0 0
    %292 = vmatprep.subr.bf16.mxu0 0
    %293 = vmatpush1.bf16.msra.mxu0 0
    %294 = vmatprep.mubr.bf16.mxu0 0
    %295 = vmatmul.mubr.bf16.gmra.mrb[0].mxu0 %v47
    %v296 = vpop.f32.mrb[0].mxu0
    %v297 = vadd.f32 %v85, %v296
    %v298 = vpop.f32.mrb[0].mxu0
    %v299 = vadd.f32 %v89, %v298
    %v300 = vpop.f32.mrb[0].mxu0
    %v301 = vpop.f32.mrb[0].mxu0
    %302 = vdwg.mxu0
    %303 = vmatprep.subr.bf16.mxu0 %v201
    %304 = vmatpush1.bf16.msra.mxu0 %v200
    %305 = vmatprep.subr.bf16.mxu0 %v205
    %306 = vmatpush1.bf16.msra.mxu0 %v204
    %307 = vmatprep.subr.bf16.mxu0 %v209
    %308 = vmatpush1.bf16.msra.mxu0 %v208
    %309 = vmatprep.subr.bf16.mxu0 %v213
    %310 = vmatpush1.bf16.msra.mxu0 %v212
    %311 = vmatprep.subr.bf16.mxu0 %v217
    %312 = vmatpush1.bf16.msra.mxu0 %v216
    %313 = vmatprep.subr.bf16.mxu0 %v221
    %314 = vmatpush1.bf16.msra.mxu0 %v220
    %315 = vmatprep.subr.bf16.mxu0 %v225
    %316 = vmatpush1.bf16.msra.mxu0 %v224
    %317 = vmatprep.subr.bf16.mxu0 %v229
    %318 = vmatpush1.bf16.msra.mxu0 %v228
    %319 = vmatprep.subr.bf16.mxu0 0
    %320 = vmatpush1.bf16.msra.mxu0 0
    %321 = vmatprep.subr.bf16.mxu0 0
    %322 = vmatpush1.bf16.msra.mxu0 0
    %323 = vmatprep.subr.bf16.mxu0 0
    %324 = vmatpush1.bf16.msra.mxu0 0
    %325 = vmatprep.subr.bf16.mxu0 0
    %326 = vmatpush1.bf16.msra.mxu0 0
    %327 = vmatprep.subr.bf16.mxu0 0
    %328 = vmatpush1.bf16.msra.mxu0 0
    %329 = vmatprep.subr.bf16.mxu0 0
    %330 = vmatpush1.bf16.msra.mxu0 0
    %331 = vmatprep.subr.bf16.mxu0 0
    %332 = vmatpush1.bf16.msra.mxu0 0
    %333 = vmatprep.subr.bf16.mxu0 0
    %334 = vmatpush1.bf16.msra.mxu0 0
    %335 = vmatprep.mubr.bf16.mxu0 0
    %336 = vmatmul.mubr.bf16.gmra.mrb[0].mxu0 %v47
    %v337 = vpop.f32.mrb[0].mxu0
    %v338 = vadd.f32 %v93, %v337
    %v339 = vpop.f32.mrb[0].mxu0
    %v340 = vadd.f32 %v97, %v339
    %v341 = vpop.f32.mrb[0].mxu0
    %v342 = vpop.f32.mrb[0].mxu0
    %343 = vdwg.mxu0
    %v345 = vcombine.high %v297, %v297
    %v347 = vunpack.c.l.s4 1966171168
    %v348 = vunpack.c.0.s8 %v347
    %v349 = vlaneseq
    %v350 = vshrl.u32 %v349, 7
    %v351 = vsub.s32 %v348, %v350
    %v352 = vrot.slane %v297, %v351
    %v354 = vunpack.c.l.s4 1966171168
    %v355 = vunpack.c.0.s8 %v354
    %v356 = vlaneseq
    %v357 = vshrl.u32 %v356, 7
    %v358 = vsub.s32 %v355, %v357
    %v359 = vrot.slane %v345, %v358
    %v360 = vcombine.high %v352, %v352
    %v361 = vcombine.high %v359, %v359
    %v363 = vunpack.c.l.s4 1966171168
    %v364 = vunpack.c.0.s8 %v363
    %v365 = vlaneseq
    %v366 = vshrl.u32 %v365, 7
    %v367 = vsub.s32 %v364, %v366
    %v368 = vrot.slane %v352, %v367
    %v370 = vunpack.c.l.s4 1966171168
    %v371 = vunpack.c.0.s8 %v370
    %v372 = vlaneseq
    %v373 = vshrl.u32 %v372, 7
    %v374 = vsub.s32 %v371, %v373
    %v375 = vrot.slane %v359, %v374
    %v377 = vunpack.c.l.s4 1966171168
    %v378 = vunpack.c.0.s8 %v377
    %v379 = vlaneseq
    %v380 = vshrl.u32 %v379, 7
    %v381 = vsub.s32 %v378, %v380
    %v382 = vrot.slane %v360, %v381
    %v384 = vunpack.c.l.s4 1966171168
    %v385 = vunpack.c.0.s8 %v384
    %v386 = vlaneseq
    %v387 = vshrl.u32 %v386, 7
    %v388 = vsub.s32 %v385, %v387
    %v389 = vrot.slane %v361, %v388
    %v390 = vcombine.high %v368, %v368
    %v391 = vcombine.high %v375, %v375
    %v392 = vcombine.high %v382, %v382
    %v393 = vcombine.high %v389, %v389
    %v394 = vld [vmem:[%s3] sm:$0xff]
    %v395 = vld [vmem:[%s3 + $0x8] sm:$0xff]
    %v396 = vld [vmem:[%s3 + $0x10] sm:$0xff]
    %v397 = vld [vmem:[%s3 + $0x18] sm:$0xff]
    %v398 = vld [vmem:[%s3 + $0x20] sm:$0xff]
    %v399 = vld [vmem:[%s3 + $0x28] sm:$0xff]
    %v400 = vld [vmem:[%s3 + $0x30] sm:$0xff]
    %v401 = vld [vmem:[%s3 + $0x38] sm:$0xff]
    %v402 = vld [vmem:[%s3 + $0x40] sm:$0xff]
    %v403 = vld [vmem:[%s3 + $0x48] sm:$0xff]
    %v404 = vld [vmem:[%s3 + $0x50] sm:$0xff]
    %v405 = vld [vmem:[%s3 + $0x58] sm:$0xff]
    %v406 = vld [vmem:[%s3 + $0x60] sm:$0xff]
    %v407 = vld [vmem:[%s3 + $0x68] sm:$0xff]
    %v408 = vld [vmem:[%s3 + $0x70] sm:$0xff]
    %v409 = vld [vmem:[%s3 + $0x78] sm:$0xff]
    %v410 = vlaneseq
    %v411 = vshrl.u32 %v410, 7
    %v412 = vsub.s32 0, %v411
    %v413 = vrot.slane %v368, %v412
    %v414 = vlaneseq
    %v415 = vshrl.u32 %v414, 7
    %v416 = vsub.s32 0, %v415
    %v417 = vrot.slane %v382, %v416
    %v418 = vlaneseq
    %v419 = vshrl.u32 %v418, 7
    %v420 = vsub.s32 0, %v419
    %v421 = vrot.slane %v390, %v420
    %v422 = vlaneseq
    %v423 = vshrl.u32 %v422, 7
    %v424 = vsub.s32 0, %v423
    %v425 = vrot.slane %v392, %v424
    %v426 = vlaneseq
    %v427 = vshrl.u32 %v426, 7
    %v428 = vsub.s32 0, %v427
    %v429 = vrot.slane %v375, %v428
    %v430 = vlaneseq
    %v431 = vshrl.u32 %v430, 7
    %v432 = vsub.s32 0, %v431
    %v433 = vrot.slane %v389, %v432
    %v434 = vlaneseq
    %v435 = vshrl.u32 %v434, 7
    %v436 = vsub.s32 0, %v435
    %v437 = vrot.slane %v391, %v436
    %v438 = vlaneseq
    %v439 = vshrl.u32 %v438, 7
    %v440 = vsub.s32 0, %v439
    %v441 = vrot.slane %v393, %v440
    %v450 = vadd.f32 %v413, %v394
    %v451 = vadd.f32 %v413, %v395
    %v452 = vadd.f32 %v417, %v396
    %v453 = vadd.f32 %v417, %v397
    %v454 = vadd.f32 %v421, %v398
    %v455 = vadd.f32 %v421, %v399
    %v456 = vadd.f32 %v425, %v400
    %v457 = vadd.f32 %v425, %v401
    %v458 = vadd.f32 %v429, %v402
    %v459 = vadd.f32 %v429, %v403
    %v460 = vadd.f32 %v433, %v404
    %v461 = vadd.f32 %v433, %v405
    %v462 = vadd.f32 %v437, %v406
    %v463 = vadd.f32 %v437, %v407
    %v464 = vadd.f32 %v441, %v408
    %v465 = vadd.f32 %v441, %v409
    %v466 = vtanh.pop %v450
    %v467 = vtanh.pop %v451
    %v468 = vtanh.pop %v452
    %v469 = vtanh.pop %v453
    %v470 = vtanh.pop %v454
    %v471 = vtanh.pop %v455
    %v472 = vtanh.pop %v456
    %v473 = vtanh.pop %v457
    %v474 = vtanh.pop %v458
    %v475 = vtanh.pop %v459
    %v476 = vtanh.pop %v460
    %v477 = vtanh.pop %v461
    %v478 = vtanh.pop %v462
    %v479 = vtanh.pop %v463
    %v480 = vtanh.pop %v464
    %v481 = vtanh.pop %v465
    %v482 = vld [vmem:[%s6] sm:$0x1]
    %v484 = vlaneseq
    %v485 = vshrl.u32 %v484, 7
    %v486 = vsub.s32 0, %v485
    %v487 = vrot.slane %v482, %v486
    %v489 = vmul.f32 %v466, %v487
    %v490 = vmul.f32 %v467, %v487
    %v491 = vmul.f32 %v468, %v487
    %v492 = vmul.f32 %v469, %v487
    %v493 = vmul.f32 %v470, %v487
    %v494 = vmul.f32 %v471, %v487
    %v495 = vmul.f32 %v472, %v487
    %v496 = vmul.f32 %v473, %v487
    %v497 = vmul.f32 %v474, %v487
    %v498 = vmul.f32 %v475, %v487
    %v499 = vmul.f32 %v476, %v487
    %v500 = vmul.f32 %v477, %v487
    %v501 = vmul.f32 %v478, %v487
    %v502 = vmul.f32 %v479, %v487
    %v503 = vmul.f32 %v480, %v487
    %v504 = vmul.f32 %v481, %v487
    %505 = vadd.xlane.f32.xlu0 %v489
    %v506 = vpop.xlane.xlu0 %505
    %507 = vadd.xlane.f32.xlu0 %v490
    %v508 = vpop.xlane.xlu0 %507
    %509 = vadd.xlane.f32.xlu0 %v491
    %v510 = vpop.xlane.xlu0 %509
    %511 = vadd.xlane.f32.xlu0 %v492
    %v512 = vpop.xlane.xlu0 %511
    %513 = vadd.xlane.f32.xlu0 %v493
    %v514 = vpop.xlane.xlu0 %513
    %515 = vadd.xlane.f32.xlu0 %v494
    %v516 = vpop.xlane.xlu0 %515
    %517 = vadd.xlane.f32.xlu0 %v495
    %v518 = vpop.xlane.xlu0 %517
    %519 = vadd.xlane.f32.xlu0 %v496
    %v520 = vpop.xlane.xlu0 %519
    %521 = vadd.xlane.f32.xlu0 %v497
    %v522 = vpop.xlane.xlu0 %521
    %523 = vadd.xlane.f32.xlu0 %v498
    %v524 = vpop.xlane.xlu0 %523
    %525 = vadd.xlane.f32.xlu0 %v499
    %v526 = vpop.xlane.xlu0 %525
    %527 = vadd.xlane.f32.xlu0 %v500
    %v528 = vpop.xlane.xlu0 %527
    %529 = vadd.xlane.f32.xlu0 %v501
    %v530 = vpop.xlane.xlu0 %529
    %531 = vadd.xlane.f32.xlu0 %v502
    %v532 = vpop.xlane.xlu0 %531
    %533 = vadd.xlane.f32.xlu0 %v503
    %v534 = vpop.xlane.xlu0 %533
    %535 = vadd.xlane.f32.xlu0 %v504
    %v536 = vpop.xlane.xlu0 %535
    %v537 = vld [vmem:[#allocation2] sm:$0x1]
    %v539 = vlaneseq
    %v540 = vshrl.u32 %v539, 7
    %v541 = vsub.s32 0, %v540
    %v542 = vrot.slane %v537, %v541
    %543 = vset.pattern.permute.xlu0 0
    %544 = vperm.xlu0 %543, %v542
    %v545 = vpop.permute.xlu0 %544
    %v547 = vadd.f32 %v506, %v545
    %v548 = vadd.f32 %v508, %v545
    %v549 = vadd.f32 %v510, %v545
    %v550 = vadd.f32 %v512, %v545
    %v551 = vadd.f32 %v514, %v545
    %v552 = vadd.f32 %v516, %v545
    %v553 = vadd.f32 %v518, %v545
    %v554 = vadd.f32 %v520, %v545
    %v555 = vadd.f32 %v522, %v545
    %v556 = vadd.f32 %v524, %v545
    %v557 = vadd.f32 %v526, %v545
    %v558 = vadd.f32 %v528, %v545
    %v559 = vadd.f32 %v530, %v545
    %v560 = vadd.f32 %v532, %v545
    %v561 = vadd.f32 %v534, %v545
    %v562 = vadd.f32 %v536, %v545
    %v579 = vlaneseq
    %v580 = vand.u32 %v579, 127
    %v581 = vlaneseq
    %v582 = vshrl.u32 %v581, 7
    %v583 = vsub.s32 %v580, %v582
    %v584 = vrot.slane %v547, %v583
    %v585 = vadd.s32 %v580, 4294967288
    %v586 = vlaneseq
    %v587 = vshrl.u32 %v586, 7
    %v588 = vsub.s32 %v585, %v587
    %v589 = vrot.slane %v548, %v588
    %vm590 = vcmask 130112
    %v591 = vsel %vm590, %v589, %v584
    %v592 = vlaneseq
    %v593 = vshrl.u32 %v592, 7
    %v594 = vsub.s32 %v580, %v593
    %v595 = vrot.slane %v549, %v594
    %v596 = vlaneseq
    %v597 = vshrl.u32 %v596, 7
    %v598 = vsub.s32 %v585, %v597
    %v599 = vrot.slane %v550, %v598
    %v600 = vsel %vm590, %v599, %v595
    %v601 = vlaneseq
    %v602 = vshrl.u32 %v601, 7
    %v603 = vsub.s32 %v580, %v602
    %v604 = vrot.slane %v551, %v603
    %v605 = vlaneseq
    %v606 = vshrl.u32 %v605, 7
    %v607 = vsub.s32 %v585, %v606
    %v608 = vrot.slane %v552, %v607
    %v609 = vsel %vm590, %v608, %v604
    %v610 = vlaneseq
    %v611 = vshrl.u32 %v610, 7
    %v612 = vsub.s32 %v580, %v611
    %v613 = vrot.slane %v553, %v612
    %v614 = vlaneseq
    %v615 = vshrl.u32 %v614, 7
    %v616 = vsub.s32 %v585, %v615
    %v617 = vrot.slane %v554, %v616
    %v618 = vsel %vm590, %v617, %v613
    %v619 = vlaneseq
    %v620 = vshrl.u32 %v619, 7
    %v621 = vsub.s32 %v580, %v620
    %v622 = vrot.slane %v555, %v621
    %v623 = vlaneseq
    %v624 = vshrl.u32 %v623, 7
    %v625 = vsub.s32 %v585, %v624
    %v626 = vrot.slane %v556, %v625
    %v627 = vsel %vm590, %v626, %v622
    %v628 = vlaneseq
    %v629 = vshrl.u32 %v628, 7
    %v630 = vsub.s32 %v580, %v629
    %v631 = vrot.slane %v557, %v630
    %v632 = vlaneseq
    %v633 = vshrl.u32 %v632, 7
    %v634 = vsub.s32 %v585, %v633
    %v635 = vrot.slane %v558, %v634
    %v636 = vsel %vm590, %v635, %v631
    %v637 = vlaneseq
    %v638 = vshrl.u32 %v637, 7
    %v639 = vsub.s32 %v580, %v638
    %v640 = vrot.slane %v559, %v639
    %v641 = vlaneseq
    %v642 = vshrl.u32 %v641, 7
    %v643 = vsub.s32 %v585, %v642
    %v644 = vrot.slane %v560, %v643
    %v645 = vsel %vm590, %v644, %v640
    %v646 = vlaneseq
    %v647 = vshrl.u32 %v646, 7
    %v648 = vsub.s32 %v580, %v647
    %v649 = vrot.slane %v561, %v648
    %v650 = vlaneseq
    %v651 = vshrl.u32 %v650, 7
    %v652 = vsub.s32 %v585, %v651
    %v653 = vrot.slane %v562, %v652
    %v654 = vsel %vm590, %v653, %v649
    %vm655 = vcmask 1041409
    %v656 = vsel %vm655, %v600, %v591
    %vm657 = vcmask 1042434
    %v658 = vsel %vm657, %v609, %v656
    %vm659 = vcmask 1043459
    %v660 = vsel %vm659, %v618, %v658
    %vm661 = vcmask 1044484
    %v662 = vsel %vm661, %v627, %v660
    %vm663 = vcmask 1045509
    %v664 = vsel %vm663, %v636, %v662
    %vm665 = vcmask 1046534
    %v666 = vsel %vm665, %v645, %v664
    %vm667 = vcmask 1047559
    %v668 = vsel %vm667, %v654, %v666
    %vm670 = vcmask 130048
    %v671 = vsel %vm670, %v668, -inf
    %672 = vmax.xlane.f32.xlu0 %v671
    %v673 = vpop.xlane.xlu0 %672
    %v675 = vlaneseq
    %v676 = vshrl.u32 %v675, 7
    %v677 = vsub.s32 0, %v676
    %v678 = vrot.slane %v673, %v677
    %v679 = vlaneseq
    %v680 = vshrl.u32 %v679, 7
    %v681 = vsub.s32 1, %v680
    %v682 = vrot.slane %v673, %v681
    %v683 = vlaneseq
    %v684 = vshrl.u32 %v683, 7
    %v685 = vsub.s32 2, %v684
    %v686 = vrot.slane %v673, %v685
    %v687 = vlaneseq
    %v688 = vshrl.u32 %v687, 7
    %v689 = vsub.s32 3, %v688
    %v690 = vrot.slane %v673, %v689
    %v691 = vlaneseq
    %v692 = vshrl.u32 %v691, 7
    %v693 = vsub.s32 4, %v692
    %v694 = vrot.slane %v673, %v693
    %v695 = vlaneseq
    %v696 = vshrl.u32 %v695, 7
    %v697 = vsub.s32 5, %v696
    %v698 = vrot.slane %v673, %v697
    %v699 = vlaneseq
    %v700 = vshrl.u32 %v699, 7
    %v701 = vsub.s32 6, %v700
    %v702 = vrot.slane %v673, %v701
    %v703 = vlaneseq
    %v704 = vshrl.u32 %v703, 7
    %v705 = vsub.s32 7, %v704
    %v706 = vrot.slane %v673, %v705
    %v715 = vsub.f32 %v547, %v678
    %v716 = vsub.f32 %v548, %v678
    %v717 = vsub.f32 %v549, %v682
    %v718 = vsub.f32 %v550, %v682
    %v719 = vsub.f32 %v551, %v686
    %v720 = vsub.f32 %v552, %v686
    %v721 = vsub.f32 %v553, %v690
    %v722 = vsub.f32 %v554, %v690
    %v723 = vsub.f32 %v555, %v694
    %v724 = vsub.f32 %v556, %v694
    %v725 = vsub.f32 %v557, %v698
    %v726 = vsub.f32 %v558, %v698
    %v727 = vsub.f32 %v559, %v702
    %v728 = vsub.f32 %v560, %v702
    %v729 = vsub.f32 %v561, %v706
    %v730 = vsub.f32 %v562, %v706
    %v731 = vmul.f32 %v715, 1.442695
    %v732 = vpow.pop %v731
    %v733 = vmul.f32 %v716, 1.442695
    %v734 = vpow.pop %v733
    %v735 = vmul.f32 %v717, 1.442695
    %v736 = vpow.pop %v735
    %v737 = vmul.f32 %v718, 1.442695
    %v738 = vpow.pop %v737
    %v739 = vmul.f32 %v719, 1.442695
    %v740 = vpow.pop %v739
    %v741 = vmul.f32 %v720, 1.442695
    %v742 = vpow.pop %v741
    %v743 = vmul.f32 %v721, 1.442695
    %v744 = vpow.pop %v743
    %v745 = vmul.f32 %v722, 1.442695
    %v746 = vpow.pop %v745
    %v747 = vmul.f32 %v723, 1.442695
    %v748 = vpow.pop %v747
    %v749 = vmul.f32 %v724, 1.442695
    %v750 = vpow.pop %v749
    %v751 = vmul.f32 %v725, 1.442695
    %v752 = vpow.pop %v751
    %v753 = vmul.f32 %v726, 1.442695
    %v754 = vpow.pop %v753
    %v755 = vmul.f32 %v727, 1.442695
    %v756 = vpow.pop %v755
    %v757 = vmul.f32 %v728, 1.442695
    %v758 = vpow.pop %v757
    %v759 = vmul.f32 %v729, 1.442695
    %v760 = vpow.pop %v759
    %v761 = vmul.f32 %v730, 1.442695
    %v762 = vpow.pop %v761
    %779 = vset.pattern.permute.xlu0 0
    %780 = vperm.xlu0 %779, %v732
    %v781 = vpop.permute.xlu0 %780
    %782 = vset.pattern.permute.xlu0 0
    %783 = vperm.xlu0 %782, %v734
    %v784 = vpop.permute.xlu0 %783
    %785 = vset.pattern.permute.xlu0 0
    %786 = vperm.xlu0 %785, %v736
    %v787 = vpop.permute.xlu0 %786
    %788 = vset.pattern.permute.xlu0 0
    %789 = vperm.xlu0 %788, %v738
    %v790 = vpop.permute.xlu0 %789
    %791 = vset.pattern.permute.xlu0 0
    %792 = vperm.xlu0 %791, %v740
    %v793 = vpop.permute.xlu0 %792
    %794 = vset.pattern.permute.xlu0 0
    %795 = vperm.xlu0 %794, %v742
    %v796 = vpop.permute.xlu0 %795
    %797 = vset.pattern.permute.xlu0 0
    %798 = vperm.xlu0 %797, %v744
    %v799 = vpop.permute.xlu0 %798
    %800 = vset.pattern.permute.xlu0 0
    %801 = vperm.xlu0 %800, %v746
    %v802 = vpop.permute.xlu0 %801
    %803 = vset.pattern.permute.xlu0 0
    %804 = vperm.xlu0 %803, %v748
    %v805 = vpop.permute.xlu0 %804
    %806 = vset.pattern.permute.xlu0 0
    %807 = vperm.xlu0 %806, %v750
    %v808 = vpop.permute.xlu0 %807
    %809 = vset.pattern.permute.xlu0 0
    %810 = vperm.xlu0 %809, %v752
    %v811 = vpop.permute.xlu0 %810
    %812 = vset.pattern.permute.xlu0 0
    %813 = vperm.xlu0 %812, %v754
    %v814 = vpop.permute.xlu0 %813
    %815 = vset.pattern.permute.xlu0 0
    %816 = vperm.xlu0 %815, %v756
    %v817 = vpop.permute.xlu0 %816
    %818 = vset.pattern.permute.xlu0 0
    %819 = vperm.xlu0 %818, %v758
    %v820 = vpop.permute.xlu0 %819
    %821 = vset.pattern.permute.xlu0 0
    %822 = vperm.xlu0 %821, %v760
    %v823 = vpop.permute.xlu0 %822
    %824 = vset.pattern.permute.xlu0 0
    %825 = vperm.xlu0 %824, %v762
    %v826 = vpop.permute.xlu0 %825
    %v827 = vlaneseq
    %v828 = vshrl.u32 %v827, 7
    %v829 = vsub.s32 %v580, %v828
    %v830 = vrot.slane %v781, %v829
    %v831 = vlaneseq
    %v832 = vshrl.u32 %v831, 7
    %v833 = vsub.s32 %v585, %v832
    %v834 = vrot.slane %v784, %v833
    %v835 = vsel %vm590, %v834, %v830
    %v836 = vlaneseq
    %v837 = vshrl.u32 %v836, 7
    %v838 = vsub.s32 %v580, %v837
    %v839 = vrot.slane %v787, %v838
    %v840 = vlaneseq
    %v841 = vshrl.u32 %v840, 7
    %v842 = vsub.s32 %v585, %v841
    %v843 = vrot.slane %v790, %v842
    %v844 = vsel %vm590, %v843, %v839
    %v845 = vlaneseq
    %v846 = vshrl.u32 %v845, 7
    %v847 = vsub.s32 %v580, %v846
    %v848 = vrot.slane %v793, %v847
    %v849 = vlaneseq
    %v850 = vshrl.u32 %v849, 7
    %v851 = vsub.s32 %v585, %v850
    %v852 = vrot.slane %v796, %v851
    %v853 = vsel %vm590, %v852, %v848
    %v854 = vlaneseq
    %v855 = vshrl.u32 %v854, 7
    %v856 = vsub.s32 %v580, %v855
    %v857 = vrot.slane %v799, %v856
    %v858 = vlaneseq
    %v859 = vshrl.u32 %v858, 7
    %v860 = vsub.s32 %v585, %v859
    %v861 = vrot.slane %v802, %v860
    %v862 = vsel %vm590, %v861, %v857
    %v863 = vlaneseq
    %v864 = vshrl.u32 %v863, 7
    %v865 = vsub.s32 %v580, %v864
    %v866 = vrot.slane %v805, %v865
    %v867 = vlaneseq
    %v868 = vshrl.u32 %v867, 7
    %v869 = vsub.s32 %v585, %v868
    %v870 = vrot.slane %v808, %v869
    %v871 = vsel %vm590, %v870, %v866
    %v872 = vlaneseq
    %v873 = vshrl.u32 %v872, 7
    %v874 = vsub.s32 %v580, %v873
    %v875 = vrot.slane %v811, %v874
    %v876 = vlaneseq
    %v877 = vshrl.u32 %v876, 7
    %v878 = vsub.s32 %v585, %v877
    %v879 = vrot.slane %v814, %v878
    %v880 = vsel %vm590, %v879, %v875
    %v881 = vlaneseq
    %v882 = vshrl.u32 %v881, 7
    %v883 = vsub.s32 %v580, %v882
    %v884 = vrot.slane %v817, %v883
    %v885 = vlaneseq
    %v886 = vshrl.u32 %v885, 7
    %v887 = vsub.s32 %v585, %v886
    %v888 = vrot.slane %v820, %v887
    %v889 = vsel %vm590, %v888, %v884
    %v890 = vlaneseq
    %v891 = vshrl.u32 %v890, 7
    %v892 = vsub.s32 %v580, %v891
    %v893 = vrot.slane %v823, %v892
    %v894 = vlaneseq
    %v895 = vshrl.u32 %v894, 7
    %v896 = vsub.s32 %v585, %v895
    %v897 = vrot.slane %v826, %v896
    %v898 = vsel %vm590, %v897, %v893
    %v899 = vsel %vm655, %v844, %v835
    %v900 = vsel %vm657, %v853, %v899
    %v901 = vsel %vm659, %v862, %v900
    %v902 = vsel %vm661, %v871, %v901
    %v903 = vsel %vm663, %v880, %v902
    %v904 = vsel %vm665, %v889, %v903
    %v905 = vsel %vm667, %v898, %v904
    %v907 = vsel %vm670, %v905, 0.0
    %908 = vadd.xlane.f32.xlu0 %v907
    %v909 = vpop.xlane.xlu0 %908
    %v911 = vlaneseq
    %v912 = vshrl.u32 %v911, 7
    %v913 = vsub.s32 0, %v912
    %v914 = vrot.slane %v909, %v913
    %v915 = vlaneseq
    %v916 = vshrl.u32 %v915, 7
    %v917 = vsub.s32 1, %v916
    %v918 = vrot.slane %v909, %v917
    %v919 = vlaneseq
    %v920 = vshrl.u32 %v919, 7
    %v921 = vsub.s32 2, %v920
    %v922 = vrot.slane %v909, %v921
    %v923 = vlaneseq
    %v924 = vshrl.u32 %v923, 7
    %v925 = vsub.s32 3, %v924
    %v926 = vrot.slane %v909, %v925
    %v927 = vlaneseq
    %v928 = vshrl.u32 %v927, 7
    %v929 = vsub.s32 4, %v928
    %v930 = vrot.slane %v909, %v929
    %v931 = vlaneseq
    %v932 = vshrl.u32 %v931, 7
    %v933 = vsub.s32 5, %v932
    %v934 = vrot.slane %v909, %v933
    %v935 = vlaneseq
    %v936 = vshrl.u32 %v935, 7
    %v937 = vsub.s32 6, %v936
    %v938 = vrot.slane %v909, %v937
    %v939 = vlaneseq
    %v940 = vshrl.u32 %v939, 7
    %v941 = vsub.s32 7, %v940
    %v942 = vrot.slane %v909, %v941
    %v951 = vrcp.pop %v914
    %v952 = vmul.f32 %v732, %v951
    %v953 = vmul.f32 %v734, %v951
    %v954 = vrcp.pop %v918
    %v955 = vmul.f32 %v736, %v954
    %v956 = vmul.f32 %v738, %v954
    %v957 = vrcp.pop %v922
    %v958 = vmul.f32 %v740, %v957
    %v959 = vmul.f32 %v742, %v957
    %v960 = vrcp.pop %v926
    %v961 = vmul.f32 %v744, %v960
    %v962 = vmul.f32 %v746, %v960
    %v963 = vrcp.pop %v930
    %v964 = vmul.f32 %v748, %v963
    %v965 = vmul.f32 %v750, %v963
    %v966 = vrcp.pop %v934
    %v967 = vmul.f32 %v752, %v966
    %v968 = vmul.f32 %v754, %v966
    %v969 = vrcp.pop %v938
    %v970 = vmul.f32 %v756, %v969
    %v971 = vmul.f32 %v758, %v969
    %v972 = vrcp.pop %v942
    %v973 = vmul.f32 %v760, %v972
    %v974 = vmul.f32 %v762, %v972
    %991 = vset.pattern.permute.xlu0 0
    %992 = vperm.xlu0 %991, %v952
    %v993 = vpop.permute.xlu0 %992
    %994 = vset.pattern.permute.xlu0 0
    %995 = vperm.xlu0 %994, %v953
    %v996 = vpop.permute.xlu0 %995
    %997 = vset.pattern.permute.xlu0 0
    %998 = vperm.xlu0 %997, %v955
    %v999 = vpop.permute.xlu0 %998
    %1000 = vset.pattern.permute.xlu0 0
    %1001 = vperm.xlu0 %1000, %v956
    %v1002 = vpop.permute.xlu0 %1001
    %1003 = vset.pattern.permute.xlu0 0
    %1004 = vperm.xlu0 %1003, %v958
    %v1005 = vpop.permute.xlu0 %1004
    %1006 = vset.pattern.permute.xlu0 0
    %1007 = vperm.xlu0 %1006, %v959
    %v1008 = vpop.permute.xlu0 %1007
    %1009 = vset.pattern.permute.xlu0 0
    %1010 = vperm.xlu0 %1009, %v961
    %v1011 = vpop.permute.xlu0 %1010
    %1012 = vset.pattern.permute.xlu0 0
    %1013 = vperm.xlu0 %1012, %v962
    %v1014 = vpop.permute.xlu0 %1013
    %1015 = vset.pattern.permute.xlu0 0
    %1016 = vperm.xlu0 %1015, %v964
    %v1017 = vpop.permute.xlu0 %1016
    %1018 = vset.pattern.permute.xlu0 0
    %1019 = vperm.xlu0 %1018, %v965
    %v1020 = vpop.permute.xlu0 %1019
    %1021 = vset.pattern.permute.xlu0 0
    %1022 = vperm.xlu0 %1021, %v967
    %v1023 = vpop.permute.xlu0 %1022
    %1024 = vset.pattern.permute.xlu0 0
    %1025 = vperm.xlu0 %1024, %v968
    %v1026 = vpop.permute.xlu0 %1025
    %1027 = vset.pattern.permute.xlu0 0
    %1028 = vperm.xlu0 %1027, %v970
    %v1029 = vpop.permute.xlu0 %1028
    %1030 = vset.pattern.permute.xlu0 0
    %1031 = vperm.xlu0 %1030, %v971
    %v1032 = vpop.permute.xlu0 %1031
    %1033 = vset.pattern.permute.xlu0 0
    %1034 = vperm.xlu0 %1033, %v973
    %v1035 = vpop.permute.xlu0 %1034
    %1036 = vset.pattern.permute.xlu0 0
    %1037 = vperm.xlu0 %1036, %v974
    %v1038 = vpop.permute.xlu0 %1037
    %v1039 = vlaneseq
    %v1040 = vshrl.u32 %v1039, 7
    %v1041 = vsub.s32 %v580, %v1040
    %v1042 = vrot.slane %v993, %v1041
    %v1043 = vlaneseq
    %v1044 = vshrl.u32 %v1043, 7
    %v1045 = vsub.s32 %v585, %v1044
    %v1046 = vrot.slane %v996, %v1045
    %v1047 = vsel %vm590, %v1046, %v1042
    %v1048 = vlaneseq
    %v1049 = vshrl.u32 %v1048, 7
    %v1050 = vsub.s32 %v580, %v1049
    %v1051 = vrot.slane %v999, %v1050
    %v1052 = vlaneseq
    %v1053 = vshrl.u32 %v1052, 7
    %v1054 = vsub.s32 %v585, %v1053
    %v1055 = vrot.slane %v1002, %v1054
    %v1056 = vsel %vm590, %v1055, %v1051
    %v1057 = vlaneseq
    %v1058 = vshrl.u32 %v1057, 7
    %v1059 = vsub.s32 %v580, %v1058
    %v1060 = vrot.slane %v1005, %v1059
    %v1061 = vlaneseq
    %v1062 = vshrl.u32 %v1061, 7
    %v1063 = vsub.s32 %v585, %v1062
    %v1064 = vrot.slane %v1008, %v1063
    %v1065 = vsel %vm590, %v1064, %v1060
    %v1066 = vlaneseq
    %v1067 = vshrl.u32 %v1066, 7
    %v1068 = vsub.s32 %v580, %v1067
    %v1069 = vrot.slane %v1011, %v1068
    %v1070 = vlaneseq
    %v1071 = vshrl.u32 %v1070, 7
    %v1072 = vsub.s32 %v585, %v1071
    %v1073 = vrot.slane %v1014, %v1072
    %v1074 = vsel %vm590, %v1073, %v1069
    %v1075 = vlaneseq
    %v1076 = vshrl.u32 %v1075, 7
    %v1077 = vsub.s32 %v580, %v1076
    %v1078 = vrot.slane %v1017, %v1077
    %v1079 = vlaneseq
    %v1080 = vshrl.u32 %v1079, 7
    %v1081 = vsub.s32 %v585, %v1080
    %v1082 = vrot.slane %v1020, %v1081
    %v1083 = vsel %vm590, %v1082, %v1078
    %v1084 = vlaneseq
    %v1085 = vshrl.u32 %v1084, 7
    %v1086 = vsub.s32 %v580, %v1085
    %v1087 = vrot.slane %v1023, %v1086
    %v1088 = vlaneseq
    %v1089 = vshrl.u32 %v1088, 7
    %v1090 = vsub.s32 %v585, %v1089
    %v1091 = vrot.slane %v1026, %v1090
    %v1092 = vsel %vm590, %v1091, %v1087
    %v1093 = vlaneseq
    %v1094 = vshrl.u32 %v1093, 7
    %v1095 = vsub.s32 %v580, %v1094
    %v1096 = vrot.slane %v1029, %v1095
    %v1097 = vlaneseq
    %v1098 = vshrl.u32 %v1097, 7
    %v1099 = vsub.s32 %v585, %v1098
    %v1100 = vrot.slane %v1032, %v1099
    %v1101 = vsel %vm590, %v1100, %v1096
    %v1102 = vlaneseq
    %v1103 = vshrl.u32 %v1102, 7
    %v1104 = vsub.s32 %v580, %v1103
    %v1105 = vrot.slane %v1035, %v1104
    %v1106 = vlaneseq
    %v1107 = vshrl.u32 %v1106, 7
    %v1108 = vsub.s32 %v585, %v1107
    %v1109 = vrot.slane %v1038, %v1108
    %v1110 = vsel %vm590, %v1109, %v1105
    %v1111 = vsel %vm655, %v1056, %v1047
    %v1112 = vsel %vm657, %v1065, %v1111
    %v1113 = vsel %vm659, %v1074, %v1112
    %v1114 = vsel %vm661, %v1083, %v1113
    %v1115 = vsel %vm663, %v1092, %v1114
    %v1116 = vsel %vm665, %v1101, %v1115
    %v1117 = vsel %vm667, %v1110, %v1116
    %1119 = vst.msk [vmem:[#allocation3] sm:$0xff] %vm670, %v1117
    %v1120 = vpack.c.bf16 %v953, %v952
    %v1121 = vpack.c.bf16 %v956, %v955
    %v1122 = vpack.c.bf16 %v959, %v958
    %v1123 = vpack.c.bf16 %v962, %v961
    %v1124 = vpack.c.bf16 %v965, %v964
    %v1125 = vpack.c.bf16 %v968, %v967
    %v1126 = vpack.c.bf16 %v971, %v970
    %v1127 = vpack.c.bf16 %v974, %v973
    %v1128 = vld [vmem:[%s2] sm:$0xf]
    %v1129 = vld [vmem:[%s2 + $0x4] sm:$0xf]
    %v1130 = vld [vmem:[%s2 + $0x8] sm:$0xf]
    %v1131 = vld [vmem:[%s2 + $0xc] sm:$0xf]
    %v1132 = vld [vmem:[%s2 + $0x10] sm:$0xf]
    %v1133 = vld [vmem:[%s2 + $0x14] sm:$0xf]
    %v1134 = vld [vmem:[%s2 + $0x18] sm:$0xf]
    %v1135 = vld [vmem:[%s2 + $0x1c] sm:$0xf]
    %v1136 = vld [vmem:[%s2 + $0x20] sm:$0xf]
    %v1137 = vld [vmem:[%s2 + $0x24] sm:$0xf]
    %v1138 = vld [vmem:[%s2 + $0x28] sm:$0xf]
    %v1139 = vld [vmem:[%s2 + $0x2c] sm:$0xf]
    %v1140 = vld [vmem:[%s2 + $0x30] sm:$0xf]
    %v1141 = vld [vmem:[%s2 + $0x34] sm:$0xf]
    %v1142 = vld [vmem:[%s2 + $0x38] sm:$0xf]
    %v1143 = vld [vmem:[%s2 + $0x3c] sm:$0xf]
    %v1145 = vunpack.c.l.b16 %v1120
    %v1146 = vunpack.c.h.b16 %v1120
    %1147 = vset.pattern.permute.xlu0 0
    %1148 = vperm.xlu0 %1147, %v1145
    %v1149 = vpop.permute.xlu0 %1148
    %1150 = vset.pattern.permute.xlu0 0
    %1151 = vperm.xlu0 %1150, %v1146
    %v1152 = vpop.permute.xlu0 %1151
    %v1153 = vlaneseq
    %v1154 = vshrl.u32 %v1153, 7
    %v1155 = vsub.s32 %v580, %v1154
    %v1156 = vrot.slane %v1149, %v1155
    %v1157 = vlaneseq
    %v1158 = vshrl.u32 %v1157, 7
    %v1159 = vsub.s32 %v585, %v1158
    %v1160 = vrot.slane %v1152, %v1159
    %v1161 = vsel %vm590, %v1160, %v1156
    %v1162 = vpack.c.b16 %v1161, %v1161
    %v1165 = vunpack.c.l.b16 %v1128
    %v1166 = vunpack.c.l.b16 %v1129
    %v1167 = vpack.c.b16 %v1166, %v1165
    %v1170 = vsel %vm670, %v1162, 0
    %1172 = vmatprep.subr.bf16.mxu0 0
    %1173 = vmatpush1.bf16.msra.mxu0 %v1167
    %1174 = vmatprep.subr.bf16.mxu0 0
    %1175 = vmatpush1.bf16.msra.mxu0 0
    %1176 = vmatprep.subr.bf16.mxu0 0
    %1177 = vmatpush1.bf16.msra.mxu0 0
    %1178 = vmatprep.subr.bf16.mxu0 0
    %1179 = vmatpush1.bf16.msra.mxu0 0
    %1180 = vmatprep.subr.bf16.mxu0 0
    %1181 = vmatpush1.bf16.msra.mxu0 0
    %1182 = vmatprep.subr.bf16.mxu0 0
    %1183 = vmatpush1.bf16.msra.mxu0 0
    %1184 = vmatprep.subr.bf16.mxu0 0
    %1185 = vmatpush1.bf16.msra.mxu0 0
    %1186 = vmatprep.subr.bf16.mxu0 0
    %1187 = vmatpush1.bf16.msra.mxu0 0
    %1188 = vmatprep.subr.bf16.mxu0 0
    %1189 = vmatpush1.bf16.msra.mxu0 0
    %1190 = vmatprep.subr.bf16.mxu0 0
    %1191 = vmatpush1.bf16.msra.mxu0 0
    %1192 = vmatprep.subr.bf16.mxu0 0
    %1193 = vmatpush1.bf16.msra.mxu0 0
    %1194 = vmatprep.subr.bf16.mxu0 0
    %1195 = vmatpush1.bf16.msra.mxu0 0
    %1196 = vmatprep.subr.bf16.mxu0 0
    %1197 = vmatpush1.bf16.msra.mxu0 0
    %1198 = vmatprep.subr.bf16.mxu0 0
    %1199 = vmatpush1.bf16.msra.mxu0 0
    %1200 = vmatprep.subr.bf16.mxu0 0
    %1201 = vmatpush1.bf16.msra.mxu0 0
    %1202 = vmatprep.subr.bf16.mxu0 0
    %1203 = vmatpush1.bf16.msra.mxu0 0
    %1204 = vmatprep.mubr.bf16.mxu0 0
    %1205 = vmatmul.mubr.bf16.gmra.mrb[0].mxu0 %v1170
    %v1206 = vpop.f32.mrb[0].mxu0
    %v1207 = vadd.f32 0.0, %v1206
    %v1208 = vpop.f32.mrb[0].mxu0
    %v1209 = vpop.f32.mrb[0].mxu0
    %v1210 = vpop.f32.mrb[0].mxu0
    %1211 = vdwg.mxu0
    %v1213 = vunpack.c.l.b16 %v1121
    %v1214 = vunpack.c.h.b16 %v1121
    %1215 = vset.pattern.permute.xlu0 0
    %1216 = vperm.xlu0 %1215, %v1213
    %v1217 = vpop.permute.xlu0 %1216
    %1218 = vset.pattern.permute.xlu0 0
    %1219 = vperm.xlu0 %1218, %v1214
    %v1220 = vpop.permute.xlu0 %1219
    %v1221 = vlaneseq
    %v1222 = vshrl.u32 %v1221, 7
    %v1223 = vsub.s32 %v580, %v1222
    %v1224 = vrot.slane %v1217, %v1223
    %v1225 = vlaneseq
    %v1226 = vshrl.u32 %v1225, 7
    %v1227 = vsub.s32 %v585, %v1226
    %v1228 = vrot.slane %v1220, %v1227
    %v1229 = vsel %vm590, %v1228, %v1224
    %v1230 = vpack.c.b16 %v1229, %v1229
    %v1233 = vunpack.c.l.b16 %v1130
    %v1234 = vunpack.c.l.b16 %v1131
    %v1235 = vpack.c.b16 %v1234, %v1233
    %v1238 = vsel %vm670, %v1230, 0
    %1240 = vmatprep.subr.bf16.mxu0 0
    %1241 = vmatpush1.bf16.msra.mxu0 %v1235
    %1242 = vmatprep.subr.bf16.mxu0 0
    %1243 = vmatpush1.bf16.msra.mxu0 0
    %1244 = vmatprep.subr.bf16.mxu0 0
    %1245 = vmatpush1.bf16.msra.mxu0 0
    %1246 = vmatprep.subr.bf16.mxu0 0
    %1247 = vmatpush1.bf16.msra.mxu0 0
    %1248 = vmatprep.subr.bf16.mxu0 0
    %1249 = vmatpush1.bf16.msra.mxu0 0
    %1250 = vmatprep.subr.bf16.mxu0 0
    %1251 = vmatpush1.bf16.msra.mxu0 0
    %1252 = vmatprep.subr.bf16.mxu0 0
    %1253 = vmatpush1.bf16.msra.mxu0 0
    %1254 = vmatprep.subr.bf16.mxu0 0
    %1255 = vmatpush1.bf16.msra.mxu0 0
    %1256 = vmatprep.subr.bf16.mxu0 0
    %1257 = vmatpush1.bf16.msra.mxu0 0
    %1258 = vmatprep.subr.bf16.mxu0 0
    %1259 = vmatpush1.bf16.msra.mxu0 0
    %1260 = vmatprep.subr.bf16.mxu0 0
    %1261 = vmatpush1.bf16.msra.mxu0 0
    %1262 = vmatprep.subr.bf16.mxu0 0
    %1263 = vmatpush1.bf16.msra.mxu0 0
    %1264 = vmatprep.subr.bf16.mxu0 0
    %1265 = vmatpush1.bf16.msra.mxu0 0
    %1266 = vmatprep.subr.bf16.mxu0 0
    %1267 = vmatpush1.bf16.msra.mxu0 0
    %1268 = vmatprep.subr.bf16.mxu0 0
    %1269 = vmatpush1.bf16.msra.mxu0 0
    %1270 = vmatprep.subr.bf16.mxu0 0
    %1271 = vmatpush1.bf16.msra.mxu0 0
    %1272 = vmatprep.mubr.bf16.mxu0 0
    %1273 = vmatmul.mubr.bf16.gmra.mrb[0].mxu0 %v1238
    %v1274 = vpop.f32.mrb[0].mxu0
    %v1275 = vadd.f32 0.0, %v1274
    %v1276 = vpop.f32.mrb[0].mxu0
    %v1277 = vpop.f32.mrb[0].mxu0
    %v1278 = vpop.f32.mrb[0].mxu0
    %1279 = vdwg.mxu0
    %v1281 = vunpack.c.l.b16 %v1122
    %v1282 = vunpack.c.h.b16 %v1122
    %1283 = vset.pattern.permute.xlu0 0
    %1284 = vperm.xlu0 %1283, %v1281
    %v1285 = vpop.permute.xlu0 %1284
    %1286 = vset.pattern.permute.xlu0 0
    %1287 = vperm.xlu0 %1286, %v1282
    %v1288 = vpop.permute.xlu0 %1287
    %v1289 = vlaneseq
    %v1290 = vshrl.u32 %v1289, 7
    %v1291 = vsub.s32 %v580, %v1290
    %v1292 = vrot.slane %v1285, %v1291
    %v1293 = vlaneseq
    %v1294 = vshrl.u32 %v1293, 7
    %v1295 = vsub.s32 %v585, %v1294
    %v1296 = vrot.slane %v1288, %v1295
    %v1297 = vsel %vm590, %v1296, %v1292
    %v1298 = vpack.c.b16 %v1297, %v1297
    %v1301 = vunpack.c.l.b16 %v1132
    %v1302 = vunpack.c.l.b16 %v1133
    %v1303 = vpack.c.b16 %v1302, %v1301
    %v1306 = vsel %vm670, %v1298, 0
    %1308 = vmatprep.subr.bf16.mxu0 0
    %1309 = vmatpush1.bf16.msra.mxu0 %v1303
    %1310 = vmatprep.subr.bf16.mxu0 0
    %1311 = vmatpush1.bf16.msra.mxu0 0
    %1312 = vmatprep.subr.bf16.mxu0 0
    %1313 = vmatpush1.bf16.msra.mxu0 0
    %1314 = vmatprep.subr.bf16.mxu0 0
    %1315 = vmatpush1.bf16.msra.mxu0 0
    %1316 = vmatprep.subr.bf16.mxu0 0
    %1317 = vmatpush1.bf16.msra.mxu0 0
    %1318 = vmatprep.subr.bf16.mxu0 0
    %1319 = vmatpush1.bf16.msra.mxu0 0
    %1320 = vmatprep.subr.bf16.mxu0 0
    %1321 = vmatpush1.bf16.msra.mxu0 0
    %1322 = vmatprep.subr.bf16.mxu0 0
    %1323 = vmatpush1.bf16.msra.mxu0 0
    %1324 = vmatprep.subr.bf16.mxu0 0
    %1325 = vmatpush1.bf16.msra.mxu0 0
    %1326 = vmatprep.subr.bf16.mxu0 0
    %1327 = vmatpush1.bf16.msra.mxu0 0
    %1328 = vmatprep.subr.bf16.mxu0 0
    %1329 = vmatpush1.bf16.msra.mxu0 0
    %1330 = vmatprep.subr.bf16.mxu0 0
    %1331 = vmatpush1.bf16.msra.mxu0 0
    %1332 = vmatprep.subr.bf16.mxu0 0
    %1333 = vmatpush1.bf16.msra.mxu0 0
    %1334 = vmatprep.subr.bf16.mxu0 0
    %1335 = vmatpush1.bf16.msra.mxu0 0
    %1336 = vmatprep.subr.bf16.mxu0 0
    %1337 = vmatpush1.bf16.msra.mxu0 0
    %1338 = vmatprep.subr.bf16.mxu0 0
    %1339 = vmatpush1.bf16.msra.mxu0 0
    %1340 = vmatprep.mubr.bf16.mxu0 0
    %1341 = vmatmul.mubr.bf16.gmra.mrb[0].mxu0 %v1306
    %v1342 = vpop.f32.mrb[0].mxu0
    %v1343 = vadd.f32 0.0, %v1342
    %v1344 = vpop.f32.mrb[0].mxu0
    %v1345 = vpop.f32.mrb[0].mxu0
    %v1346 = vpop.f32.mrb[0].mxu0
    %1347 = vdwg.mxu0
    %v1349 = vunpack.c.l.b16 %v1123
    %v1350 = vunpack.c.h.b16 %v1123
    %1351 = vset.pattern.permute.xlu0 0
    %1352 = vperm.xlu0 %1351, %v1349
    %v1353 = vpop.permute.xlu0 %1352
    %1354 = vset.pattern.permute.xlu0 0
    %1355 = vperm.xlu0 %1354, %v1350
    %v1356 = vpop.permute.xlu0 %1355
    %v1357 = vlaneseq
    %v1358 = vshrl.u32 %v1357, 7
    %v1359 = vsub.s32 %v580, %v1358
    %v1360 = vrot.slane %v1353, %v1359
    %v1361 = vlaneseq
    %v1362 = vshrl.u32 %v1361, 7
    %v1363 = vsub.s32 %v585, %v1362
    %v1364 = vrot.slane %v1356, %v1363
    %v1365 = vsel %vm590, %v1364, %v1360
    %v1366 = vpack.c.b16 %v1365, %v1365
    %v1369 = vunpack.c.l.b16 %v1134
    %v1370 = vunpack.c.l.b16 %v1135
    %v1371 = vpack.c.b16 %v1370, %v1369
    %v1374 = vsel %vm670, %v1366, 0
    %1376 = vmatprep.subr.bf16.mxu0 0
    %1377 = vmatpush1.bf16.msra.mxu0 %v1371
    %1378 = vmatprep.subr.bf16.mxu0 0
    %1379 = vmatpush1.bf16.msra.mxu0 0
    %1380 = vmatprep.subr.bf16.mxu0 0
    %1381 = vmatpush1.bf16.msra.mxu0 0
    %1382 = vmatprep.subr.bf16.mxu0 0
    %1383 = vmatpush1.bf16.msra.mxu0 0
    %1384 = vmatprep.subr.bf16.mxu0 0
    %1385 = vmatpush1.bf16.msra.mxu0 0
    %1386 = vmatprep.subr.bf16.mxu0 0
    %1387 = vmatpush1.bf16.msra.mxu0 0
    %1388 = vmatprep.subr.bf16.mxu0 0
    %1389 = vmatpush1.bf16.msra.mxu0 0
    %1390 = vmatprep.subr.bf16.mxu0 0
    %1391 = vmatpush1.bf16.msra.mxu0 0
    %1392 = vmatprep.subr.bf16.mxu0 0
    %1393 = vmatpush1.bf16.msra.mxu0 0
    %1394 = vmatprep.subr.bf16.mxu0 0
    %1395 = vmatpush1.bf16.msra.mxu0 0
    %1396 = vmatprep.subr.bf16.mxu0 0
    %1397 = vmatpush1.bf16.msra.mxu0 0
    %1398 = vmatprep.subr.bf16.mxu0 0
    %1399 = vmatpush1.bf16.msra.mxu0 0
    %1400 = vmatprep.subr.bf16.mxu0 0
    %1401 = vmatpush1.bf16.msra.mxu0 0
    %1402 = vmatprep.subr.bf16.mxu0 0
    %1403 = vmatpush1.bf16.msra.mxu0 0
    %1404 = vmatprep.subr.bf16.mxu0 0
    %1405 = vmatpush1.bf16.msra.mxu0 0
    %1406 = vmatprep.subr.bf16.mxu0 0
    %1407 = vmatpush1.bf16.msra.mxu0 0
    %1408 = vmatprep.mubr.bf16.mxu0 0
    %1409 = vmatmul.mubr.bf16.gmra.mrb[0].mxu0 %v1374
    %v1410 = vpop.f32.mrb[0].mxu0
    %v1411 = vadd.f32 0.0, %v1410
    %v1412 = vpop.f32.mrb[0].mxu0
    %v1413 = vpop.f32.mrb[0].mxu0
    %v1414 = vpop.f32.mrb[0].mxu0
    %1415 = vdwg.mxu0
    %v1417 = vunpack.c.l.b16 %v1124
    %v1418 = vunpack.c.h.b16 %v1124
    %1419 = vset.pattern.permute.xlu0 0
    %1420 = vperm.xlu0 %1419, %v1417
    %v1421 = vpop.permute.xlu0 %1420
    %1422 = vset.pattern.permute.xlu0 0
    %1423 = vperm.xlu0 %1422, %v1418
    %v1424 = vpop.permute.xlu0 %1423
    %v1425 = vlaneseq
    %v1426 = vshrl.u32 %v1425, 7
    %v1427 = vsub.s32 %v580, %v1426
    %v1428 = vrot.slane %v1421, %v1427
    %v1429 = vlaneseq
    %v1430 = vshrl.u32 %v1429, 7
    %v1431 = vsub.s32 %v585, %v1430
    %v1432 = vrot.slane %v1424, %v1431
    %v1433 = vsel %vm590, %v1432, %v1428
    %v1434 = vpack.c.b16 %v1433, %v1433
    %v1437 = vunpack.c.l.b16 %v1136
    %v1438 = vunpack.c.l.b16 %v1137
    %v1439 = vpack.c.b16 %v1438, %v1437
    %v1442 = vsel %vm670, %v1434, 0
    %1444 = vmatprep.subr.bf16.mxu0 0
    %1445 = vmatpush1.bf16.msra.mxu0 %v1439
    %1446 = vmatprep.subr.bf16.mxu0 0
    %1447 = vmatpush1.bf16.msra.mxu0 0
    %1448 = vmatprep.subr.bf16.mxu0 0
    %1449 = vmatpush1.bf16.msra.mxu0 0
    %1450 = vmatprep.subr.bf16.mxu0 0
    %1451 = vmatpush1.bf16.msra.mxu0 0
    %1452 = vmatprep.subr.bf16.mxu0 0
    %1453 = vmatpush1.bf16.msra.mxu0 0
    %1454 = vmatprep.subr.bf16.mxu0 0
    %1455 = vmatpush1.bf16.msra.mxu0 0
    %1456 = vmatprep.subr.bf16.mxu0 0
    %1457 = vmatpush1.bf16.msra.mxu0 0
    %1458 = vmatprep.subr.bf16.mxu0 0
    %1459 = vmatpush1.bf16.msra.mxu0 0
    %1460 = vmatprep.subr.bf16.mxu0 0
    %1461 = vmatpush1.bf16.msra.mxu0 0
    %1462 = vmatprep.subr.bf16.mxu0 0
    %1463 = vmatpush1.bf16.msra.mxu0 0
    %1464 = vmatprep.subr.bf16.mxu0 0
    %1465 = vmatpush1.bf16.msra.mxu0 0
    %1466 = vmatprep.subr.bf16.mxu0 0
    %1467 = vmatpush1.bf16.msra.mxu0 0
    %1468 = vmatprep.subr.bf16.mxu0 0
    %1469 = vmatpush1.bf16.msra.mxu0 0
    %1470 = vmatprep.subr.bf16.mxu0 0
    %1471 = vmatpush1.bf16.msra.mxu0 0
    %1472 = vmatprep.subr.bf16.mxu0 0
    %1473 = vmatpush1.bf16.msra.mxu0 0
    %1474 = vmatprep.subr.bf16.mxu0 0
    %1475 = vmatpush1.bf16.msra.mxu0 0
    %1476 = vmatprep.mubr.bf16.mxu0 0
    %1477 = vmatmul.mubr.bf16.gmra.mrb[0].mxu0 %v1442
    %v1478 = vpop.f32.mrb[0].mxu0
    %v1479 = vadd.f32 0.0, %v1478
    %v1480 = vpop.f32.mrb[0].mxu0
    %v1481 = vpop.f32.mrb[0].mxu0
    %v1482 = vpop.f32.mrb[0].mxu0
    %1483 = vdwg.mxu0
    %v1485 = vunpack.c.l.b16 %v1125
    %v1486 = vunpack.c.h.b16 %v1125
    %1487 = vset.pattern.permute.xlu0 0
    %1488 = vperm.xlu0 %1487, %v1485
    %v1489 = vpop.permute.xlu0 %1488
    %1490 = vset.pattern.permute.xlu0 0
    %1491 = vperm.xlu0 %1490, %v1486
    %v1492 = vpop.permute.xlu0 %1491
    %v1493 = vlaneseq
    %v1494 = vshrl.u32 %v1493, 7
    %v1495 = vsub.s32 %v580, %v1494
    %v1496 = vrot.slane %v1489, %v1495
    %v1497 = vlaneseq
    %v1498 = vshrl.u32 %v1497, 7
    %v1499 = vsub.s32 %v585, %v1498
    %v1500 = vrot.slane %v1492, %v1499
    %v1501 = vsel %vm590, %v1500, %v1496
    %v1502 = vpack.c.b16 %v1501, %v1501
    %v1505 = vunpack.c.l.b16 %v1138
    %v1506 = vunpack.c.l.b16 %v1139
    %v1507 = vpack.c.b16 %v1506, %v1505
    %v1510 = vsel %vm670, %v1502, 0
    %1512 = vmatprep.subr.bf16.mxu0 0
    %1513 = vmatpush1.bf16.msra.mxu0 %v1507
    %1514 = vmatprep.subr.bf16.mxu0 0
    %1515 = vmatpush1.bf16.msra.mxu0 0
    %1516 = vmatprep.subr.bf16.mxu0 0
    %1517 = vmatpush1.bf16.msra.mxu0 0
    %1518 = vmatprep.subr.bf16.mxu0 0
    %1519 = vmatpush1.bf16.msra.mxu0 0
    %1520 = vmatprep.subr.bf16.mxu0 0
    %1521 = vmatpush1.bf16.msra.mxu0 0
    %1522 = vmatprep.subr.bf16.mxu0 0
    %1523 = vmatpush1.bf16.msra.mxu0 0
    %1524 = vmatprep.subr.bf16.mxu0 0
    %1525 = vmatpush1.bf16.msra.mxu0 0
    %1526 = vmatprep.subr.bf16.mxu0 0
    %1527 = vmatpush1.bf16.msra.mxu0 0
    %1528 = vmatprep.subr.bf16.mxu0 0
    %1529 = vmatpush1.bf16.msra.mxu0 0
    %1530 = vmatprep.subr.bf16.mxu0 0
    %1531 = vmatpush1.bf16.msra.mxu0 0
    %1532 = vmatprep.subr.bf16.mxu0 0
    %1533 = vmatpush1.bf16.msra.mxu0 0
    %1534 = vmatprep.subr.bf16.mxu0 0
    %1535 = vmatpush1.bf16.msra.mxu0 0
    %1536 = vmatprep.subr.bf16.mxu0 0
    %1537 = vmatpush1.bf16.msra.mxu0 0
    %1538 = vmatprep.subr.bf16.mxu0 0
    %1539 = vmatpush1.bf16.msra.mxu0 0
    %1540 = vmatprep.subr.bf16.mxu0 0
    %1541 = vmatpush1.bf16.msra.mxu0 0
    %1542 = vmatprep.subr.bf16.mxu0 0
    %1543 = vmatpush1.bf16.msra.mxu0 0
    %1544 = vmatprep.mubr.bf16.mxu0 0
    %1545 = vmatmul.mubr.bf16.gmra.mrb[0].mxu0 %v1510
    %v1546 = vpop.f32.mrb[0].mxu0
    %v1547 = vadd.f32 0.0, %v1546
    %v1548 = vpop.f32.mrb[0].mxu0
    %v1549 = vpop.f32.mrb[0].mxu0
    %v1550 = vpop.f32.mrb[0].mxu0
    %1551 = vdwg.mxu0
    %v1553 = vunpack.c.l.b16 %v1126
    %v1554 = vunpack.c.h.b16 %v1126
    %1555 = vset.pattern.permute.xlu0 0
    %1556 = vperm.xlu0 %1555, %v1553
    %v1557 = vpop.permute.xlu0 %1556
    %1558 = vset.pattern.permute.xlu0 0
    %1559 = vperm.xlu0 %1558, %v1554
    %v1560 = vpop.permute.xlu0 %1559
    %v1561 = vlaneseq
    %v1562 = vshrl.u32 %v1561, 7
    %v1563 = vsub.s32 %v580, %v1562
    %v1564 = vrot.slane %v1557, %v1563
    %v1565 = vlaneseq
    %v1566 = vshrl.u32 %v1565, 7
    %v1567 = vsub.s32 %v585, %v1566
    %v1568 = vrot.slane %v1560, %v1567
    %v1569 = vsel %vm590, %v1568, %v1564
    %v1570 = vpack.c.b16 %v1569, %v1569
    %v1573 = vunpack.c.l.b16 %v1140
    %v1574 = vunpack.c.l.b16 %v1141
    %v1575 = vpack.c.b16 %v1574, %v1573
    %v1578 = vsel %vm670, %v1570, 0
    %1580 = vmatprep.subr.bf16.mxu0 0
    %1581 = vmatpush1.bf16.msra.mxu0 %v1575
    %1582 = vmatprep.subr.bf16.mxu0 0
    %1583 = vmatpush1.bf16.msra.mxu0 0
    %1584 = vmatprep.subr.bf16.mxu0 0
    %1585 = vmatpush1.bf16.msra.mxu0 0
    %1586 = vmatprep.subr.bf16.mxu0 0
    %1587 = vmatpush1.bf16.msra.mxu0 0
    %1588 = vmatprep.subr.bf16.mxu0 0
    %1589 = vmatpush1.bf16.msra.mxu0 0
    %1590 = vmatprep.subr.bf16.mxu0 0
    %1591 = vmatpush1.bf16.msra.mxu0 0
    %1592 = vmatprep.subr.bf16.mxu0 0
    %1593 = vmatpush1.bf16.msra.mxu0 0
    %1594 = vmatprep.subr.bf16.mxu0 0
    %1595 = vmatpush1.bf16.msra.mxu0 0
    %1596 = vmatprep.subr.bf16.mxu0 0
    %1597 = vmatpush1.bf16.msra.mxu0 0
    %1598 = vmatprep.subr.bf16.mxu0 0
    %1599 = vmatpush1.bf16.msra.mxu0 0
    %1600 = vmatprep.subr.bf16.mxu0 0
    %1601 = vmatpush1.bf16.msra.mxu0 0
    %1602 = vmatprep.subr.bf16.mxu0 0
    %1603 = vmatpush1.bf16.msra.mxu0 0
    %1604 = vmatprep.subr.bf16.mxu0 0
    %1605 = vmatpush1.bf16.msra.mxu0 0
    %1606 = vmatprep.subr.bf16.mxu0 0
    %1607 = vmatpush1.bf16.msra.mxu0 0
    %1608 = vmatprep.subr.bf16.mxu0 0
    %1609 = vmatpush1.bf16.msra.mxu0 0
    %1610 = vmatprep.subr.bf16.mxu0 0
    %1611 = vmatpush1.bf16.msra.mxu0 0
    %1612 = vmatprep.mubr.bf16.mxu0 0
    %1613 = vmatmul.mubr.bf16.gmra.mrb[0].mxu0 %v1578
    %v1614 = vpop.f32.mrb[0].mxu0
    %v1615 = vadd.f32 0.0, %v1614
    %v1616 = vpop.f32.mrb[0].mxu0
    %v1617 = vpop.f32.mrb[0].mxu0
    %v1618 = vpop.f32.mrb[0].mxu0
    %1619 = vdwg.mxu0
    %v1621 = vunpack.c.l.b16 %v1127
    %v1622 = vunpack.c.h.b16 %v1127
    %1623 = vset.pattern.permute.xlu0 0
    %1624 = vperm.xlu0 %1623, %v1621
    %v1625 = vpop.permute.xlu0 %1624
    %1626 = vset.pattern.permute.xlu0 0
    %1627 = vperm.xlu0 %1626, %v1622
    %v1628 = vpop.permute.xlu0 %1627
    %v1629 = vlaneseq
    %v1630 = vshrl.u32 %v1629, 7
    %v1631 = vsub.s32 %v580, %v1630
    %v1632 = vrot.slane %v1625, %v1631
    %v1633 = vlaneseq
    %v1634 = vshrl.u32 %v1633, 7
    %v1635 = vsub.s32 %v585, %v1634
    %v1636 = vrot.slane %v1628, %v1635
    %v1637 = vsel %vm590, %v1636, %v1632
    %v1638 = vpack.c.b16 %v1637, %v1637
    %v1641 = vunpack.c.l.b16 %v1142
    %v1642 = vunpack.c.l.b16 %v1143
    %v1643 = vpack.c.b16 %v1642, %v1641
    %v1646 = vsel %vm670, %v1638, 0
    %1648 = vmatprep.subr.bf16.mxu0 0
    %1649 = vmatpush1.bf16.msra.mxu0 %v1643
    %1650 = vmatprep.subr.bf16.mxu0 0
    %1651 = vmatpush1.bf16.msra.mxu0 0
    %1652 = vmatprep.subr.bf16.mxu0 0
    %1653 = vmatpush1.bf16.msra.mxu0 0
    %1654 = vmatprep.subr.bf16.mxu0 0
    %1655 = vmatpush1.bf16.msra.mxu0 0
    %1656 = vmatprep.subr.bf16.mxu0 0
    %1657 = vmatpush1.bf16.msra.mxu0 0
    %1658 = vmatprep.subr.bf16.mxu0 0
    %1659 = vmatpush1.bf16.msra.mxu0 0
    %1660 = vmatprep.subr.bf16.mxu0 0
    %1661 = vmatpush1.bf16.msra.mxu0 0
    %1662 = vmatprep.subr.bf16.mxu0 0
    %1663 = vmatpush1.bf16.msra.mxu0 0
    %1664 = vmatprep.subr.bf16.mxu0 0
    %1665 = vmatpush1.bf16.msra.mxu0 0
    %1666 = vmatprep.subr.bf16.mxu0 0
    %1667 = vmatpush1.bf16.msra.mxu0 0
    %1668 = vmatprep.subr.bf16.mxu0 0
    %1669 = vmatpush1.bf16.msra.mxu0 0
    %1670 = vmatprep.subr.bf16.mxu0 0
    %1671 = vmatpush1.bf16.msra.mxu0 0
    %1672 = vmatprep.subr.bf16.mxu0 0
    %1673 = vmatpush1.bf16.msra.mxu0 0
    %1674 = vmatprep.subr.bf16.mxu0 0
    %1675 = vmatpush1.bf16.msra.mxu0 0
    %1676 = vmatprep.subr.bf16.mxu0 0
    %1677 = vmatpush1.bf16.msra.mxu0 0
    %1678 = vmatprep.subr.bf16.mxu0 0
    %1679 = vmatpush1.bf16.msra.mxu0 0
    %1680 = vmatprep.mubr.bf16.mxu0 0
    %1681 = vmatmul.mubr.bf16.gmra.mrb[0].mxu0 %v1646
    %v1682 = vpop.f32.mrb[0].mxu0
    %v1683 = vadd.f32 0.0, %v1682
    %v1684 = vpop.f32.mrb[0].mxu0
    %v1685 = vpop.f32.mrb[0].mxu0
    %v1686 = vpop.f32.mrb[0].mxu0
    %1687 = vdwg.mxu0
    %v1688 = vld [vmem:[%s0] sm:$0xf]
    %v1689 = vld [vmem:[%s8] sm:$0xff]
    %v1690 = vld [vmem:[%s8 + $0x8] sm:$0xf]
    %v1691 = vld [vmem:[%s8 + $0xc] sm:$0xff]
    %v1692 = vld [vmem:[%s8 + $0x14] sm:$0xf]
    %v1693 = vld [vmem:[%s8 + $0x18] sm:$0xff]
    %v1694 = vld [vmem:[%s8 + $0x20] sm:$0xf]
    %v1695 = vld [vmem:[%s8 + $0x24] sm:$0xff]
    %v1696 = vld [vmem:[%s8 + $0x2c] sm:$0xf]
    %v1697 = vpack.c.bf16 %v1207, %v1207
    %v1698 = vpack.c.bf16 %v1275, %v1275
    %v1699 = vpack.c.bf16 %v1343, %v1343
    %v1700 = vpack.c.bf16 %v1411, %v1411
    %v1701 = vpack.c.bf16 %v1479, %v1479
    %v1702 = vpack.c.bf16 %v1547, %v1547
    %v1703 = vpack.c.bf16 %v1615, %v1615
    %v1704 = vpack.c.bf16 %v1683, %v1683
    %v1705 = vld [vmem:[%s9] sm:$0xff]
    %v1706 = vld [vmem:[%s9 + $0x8] sm:$0xf]
    %v1707 = vld [vmem:[%s9 + $0xc] sm:$0xff]
    %v1708 = vld [vmem:[%s9 + $0x14] sm:$0xf]
    %v1709 = vld [vmem:[%s9 + $0x18] sm:$0xff]
    %v1710 = vld [vmem:[%s9 + $0x20] sm:$0xf]
    %v1711 = vld [vmem:[%s9 + $0x24] sm:$0xff]
    %v1712 = vld [vmem:[%s9 + $0x2c] sm:$0xf]
    %v1713 = vld [vmem:[%s9 + $0x30] sm:$0xff]
    %v1714 = vld [vmem:[%s9 + $0x38] sm:$0xf]
    %v1715 = vld [vmem:[%s9 + $0x3c] sm:$0xff]
    %v1716 = vld [vmem:[%s9 + $0x44] sm:$0xf]
    %v1717 = vld [vmem:[%s9 + $0x48] sm:$0xff]
    %v1718 = vld [vmem:[%s9 + $0x50] sm:$0xf]
    %v1719 = vld [vmem:[%s9 + $0x54] sm:$0xff]
    %v1720 = vld [vmem:[%s9 + $0x5c] sm:$0xf]
    %v1721 = vld [vmem:[%s9 + $0x60] sm:$0xff]
    %v1722 = vld [vmem:[%s9 + $0x68] sm:$0xf]
    %v1723 = vld [vmem:[%s9 + $0x6c] sm:$0xff]
    %v1724 = vld [vmem:[%s9 + $0x74] sm:$0xf]
    %v1725 = vld [vmem:[%s9 + $0x78] sm:$0xff]
    %v1726 = vld [vmem:[%s9 + $0x80] sm:$0xf]
    %v1727 = vld [vmem:[%s9 + $0x84] sm:$0xff]
    %v1728 = vld [vmem:[%s9 + $0x8c] sm:$0xf]
    %v1729 = vld [vmem:[%s9 + $0x90] sm:$0xff]
    %v1730 = vld [vmem:[%s9 + $0x98] sm:$0xf]
    %v1731 = vld [vmem:[%s9 + $0x9c] sm:$0xff]
    %v1732 = vld [vmem:[%s9 + $0xa4] sm:$0xf]
    %v1733 = vld [vmem:[%s9 + $0xa8] sm:$0xff]
    %v1734 = vld [vmem:[%s9 + $0xb0] sm:$0xf]
    %v1735 = vld [vmem:[%s9 + $0xb4] sm:$0xff]
    %v1736 = vld [vmem:[%s9 + $0xbc] sm:$0xf]
    %v1745 = vunpack.c.l.b16 %v1697
    %v1746 = vunpack.c.l.b16 %v1698
    %v1747 = vunpack.c.l.b16 %v1699
    %v1748 = vunpack.c.l.b16 %v1700
    %v1749 = vunpack.c.l.b16 %v1701
    %v1750 = vunpack.c.l.b16 %v1702
    %v1751 = vunpack.c.l.b16 %v1703
    %v1752 = vunpack.c.l.b16 %v1704
    %v1753 = vrot.slane %v1746, 7
    %v1754 = vsel %vm655, %v1753, %v1745
    %v1755 = vrot.slane %v1747, 6
    %v1756 = vsel %vm657, %v1755, %v1754
    %v1757 = vrot.slane %v1748, 5
    %v1758 = vsel %vm659, %v1757, %v1756
    %v1759 = vrot.slane %v1749, 4
    %v1760 = vsel %vm661, %v1759, %v1758
    %v1761 = vrot.slane %v1750, 3
    %v1762 = vsel %vm663, %v1761, %v1760
    %v1763 = vrot.slane %v1751, 2
    %v1764 = vsel %vm665, %v1763, %v1762
    %v1765 = vrot.slane %v1752, 1
    %v1766 = vsel %vm667, %v1765, %v1764
    %v1767 = vpack.c.b16 %v1766, %v1766
    %v1801 = vunpack.c.l.b16 %v1705
    %v1802 = vunpack.c.h.b16 %v1705
    %v1803 = vunpack.c.l.b16 %v1706
    %v1804 = vunpack.c.l.b16 %v1707
    %v1805 = vunpack.c.h.b16 %v1707
    %v1806 = vunpack.c.l.b16 %v1708
    %v1807 = vunpack.c.l.b16 %v1709
    %v1808 = vunpack.c.h.b16 %v1709
    %v1809 = vunpack.c.l.b16 %v1710
    %v1810 = vunpack.c.l.b16 %v1711
    %v1811 = vunpack.c.h.b16 %v1711
    %v1812 = vunpack.c.l.b16 %v1712
    %v1813 = vunpack.c.l.b16 %v1713
    %v1814 = vunpack.c.h.b16 %v1713
    %v1815 = vunpack.c.l.b16 %v1714
    %v1816 = vunpack.c.l.b16 %v1715
    %v1817 = vunpack.c.h.b16 %v1715
    %v1818 = vunpack.c.l.b16 %v1716
    %v1819 = vunpack.c.l.b16 %v1717
    %v1820 = vunpack.c.h.b16 %v1717
    %v1821 = vunpack.c.l.b16 %v1718
    %v1822 = vunpack.c.l.b16 %v1719
    %v1823 = vunpack.c.h.b16 %v1719
    %v1824 = vunpack.c.l.b16 %v1720
    %v1825 = vunpack.c.l.b16 %v1721
    %v1826 = vunpack.c.h.b16 %v1721
    %v1827 = vunpack.c.l.b16 %v1722
    %v1828 = vunpack.c.l.b16 %v1723
    %v1829 = vunpack.c.h.b16 %v1723
    %v1830 = vunpack.c.l.b16 %v1724
    %v1831 = vunpack.c.l.b16 %v1725
    %v1832 = vunpack.c.h.b16 %v1725
    %v1833 = vunpack.c.l.b16 %v1726
    %v1834 = vunpack.c.l.b16 %v1727
    %v1835 = vunpack.c.h.b16 %v1727
    %v1836 = vunpack.c.l.b16 %v1728
    %v1837 = vunpack.c.l.b16 %v1729
    %v1838 = vunpack.c.h.b16 %v1729
    %v1839 = vunpack.c.l.b16 %v1730
    %v1840 = vunpack.c.l.b16 %v1731
    %v1841 = vunpack.c.h.b16 %v1731
    %v1842 = vunpack.c.l.b16 %v1732
    %v1843 = vunpack.c.l.b16 %v1733
    %v1844 = vunpack.c.h.b16 %v1733
    %v1845 = vunpack.c.l.b16 %v1734
    %v1846 = vunpack.c.l.b16 %v1735
    %v1847 = vunpack.c.h.b16 %v1735
    %v1848 = vunpack.c.l.b16 %v1736
    %v1849 = vpack.c.b16 %v1804, %v1801
    %v1850 = vpack.c.b16 %v1805, %v1802
    %v1851 = vpack.c.b16 %v1806, %v1803
    %v1852 = vpack.c.b16 %v1810, %v1807
    %v1853 = vpack.c.b16 %v1811, %v1808
    %v1854 = vpack.c.b16 %v1812, %v1809
    %v1855 = vpack.c.b16 %v1816, %v1813
    %v1856 = vpack.c.b16 %v1817, %v1814
    %v1857 = vpack.c.b16 %v1818, %v1815
    %v1858 = vpack.c.b16 %v1822, %v1819
    %v1859 = vpack.c.b16 %v1823, %v1820
    %v1860 = vpack.c.b16 %v1824, %v1821
    %v1861 = vpack.c.b16 %v1828, %v1825
    %v1862 = vpack.c.b16 %v1829, %v1826
    %v1863 = vpack.c.b16 %v1830, %v1827
    %v1864 = vpack.c.b16 %v1834, %v1831
    %v1865 = vpack.c.b16 %v1835, %v1832
    %v1866 = vpack.c.b16 %v1836, %v1833
    %v1867 = vpack.c.b16 %v1840, %v1837
    %v1868 = vpack.c.b16 %v1841, %v1838
    %v1869 = vpack.c.b16 %v1842, %v1839
    %v1870 = vpack.c.b16 %v1846, %v1843
    %v1871 = vpack.c.b16 %v1847, %v1844
    %v1872 = vpack.c.b16 %v1848, %v1845
    %1897 = vmatprep.subr.bf16.mxu0 %v1850
    %1898 = vmatpush1.bf16.msra.mxu0 %v1849
    %1899 = vmatprep.subr.bf16.mxu0 %v1853
    %1900 = vmatpush1.bf16.msra.mxu0 %v1852
    %1901 = vmatprep.subr.bf16.mxu0 %v1856
    %1902 = vmatpush1.bf16.msra.mxu0 %v1855
    %1903 = vmatprep.subr.bf16.mxu0 %v1859
    %1904 = vmatpush1.bf16.msra.mxu0 %v1858
    %1905 = vmatprep.subr.bf16.mxu0 %v1862
    %1906 = vmatpush1.bf16.msra.mxu0 %v1861
    %1907 = vmatprep.subr.bf16.mxu0 %v1865
    %1908 = vmatpush1.bf16.msra.mxu0 %v1864
    %1909 = vmatprep.subr.bf16.mxu0 %v1868
    %1910 = vmatpush1.bf16.msra.mxu0 %v1867
    %1911 = vmatprep.subr.bf16.mxu0 %v1871
    %1912 = vmatpush1.bf16.msra.mxu0 %v1870
    %1913 = vmatprep.subr.bf16.mxu0 0
    %1914 = vmatpush1.bf16.msra.mxu0 0
    %1915 = vmatprep.subr.bf16.mxu0 0
    %1916 = vmatpush1.bf16.msra.mxu0 0
    %1917 = vmatprep.subr.bf16.mxu0 0
    %1918 = vmatpush1.bf16.msra.mxu0 0
    %1919 = vmatprep.subr.bf16.mxu0 0
    %1920 = vmatpush1.bf16.msra.mxu0 0
    %1921 = vmatprep.subr.bf16.mxu0 0
    %1922 = vmatpush1.bf16.msra.mxu0 0
    %1923 = vmatprep.subr.bf16.mxu0 0
    %1924 = vmatpush1.bf16.msra.mxu0 0
    %1925 = vmatprep.subr.bf16.mxu0 0
    %1926 = vmatpush1.bf16.msra.mxu0 0
    %1927 = vmatprep.subr.bf16.mxu0 0
    %1928 = vmatpush1.bf16.msra.mxu0 0
    %1929 = vmatprep.mubr.bf16.mxu0 0
    %1930 = vmatmul.mubr.bf16.gmra.mrb[0].mxu0 %v1767
    %v1931 = vpop.f32.mrb[0].mxu0
    %v1932 = vadd.f32 0.0, %v1931
    %v1933 = vpop.f32.mrb[0].mxu0
    %v1934 = vadd.f32 0.0, %v1933
    %v1935 = vpop.f32.mrb[0].mxu0
    %v1936 = vpop.f32.mrb[0].mxu0
    %1937 = vdwg.mxu0
    %1938 = vmatprep.subr.bf16.mxu0 0
    %1939 = vmatpush1.bf16.msra.mxu0 %v1851
    %1940 = vmatprep.subr.bf16.mxu0 0
    %1941 = vmatpush1.bf16.msra.mxu0 %v1854
    %1942 = vmatprep.subr.bf16.mxu0 0
    %1943 = vmatpush1.bf16.msra.mxu0 %v1857
    %1944 = vmatprep.subr.bf16.mxu0 0
    %1945 = vmatpush1.bf16.msra.mxu0 %v1860
    %1946 = vmatprep.subr.bf16.mxu0 0
    %1947 = vmatpush1.bf16.msra.mxu0 %v1863
    %1948 = vmatprep.subr.bf16.mxu0 0
    %1949 = vmatpush1.bf16.msra.mxu0 %v1866
    %1950 = vmatprep.subr.bf16.mxu0 0
    %1951 = vmatpush1.bf16.msra.mxu0 %v1869
    %1952 = vmatprep.subr.bf16.mxu0 0
    %1953 = vmatpush1.bf16.msra.mxu0 %v1872
    %1954 = vmatprep.subr.bf16.mxu0 0
    %1955 = vmatpush1.bf16.msra.mxu0 0
    %1956 = vmatprep.subr.bf16.mxu0 0
    %1957 = vmatpush1.bf16.msra.mxu0 0
    %1958 = vmatprep.subr.bf16.mxu0 0
    %1959 = vmatpush1.bf16.msra.mxu0 0
    %1960 = vmatprep.subr.bf16.mxu0 0
    %1961 = vmatpush1.bf16.msra.mxu0 0
    %1962 = vmatprep.subr.bf16.mxu0 0
    %1963 = vmatpush1.bf16.msra.mxu0 0
    %1964 = vmatprep.subr.bf16.mxu0 0
    %1965 = vmatpush1.bf16.msra.mxu0 0
    %1966 = vmatprep.subr.bf16.mxu0 0
    %1967 = vmatpush1.bf16.msra.mxu0 0
    %1968 = vmatprep.subr.bf16.mxu0 0
    %1969 = vmatpush1.bf16.msra.mxu0 0
    %1970 = vmatprep.mubr.bf16.mxu0 0
    %1971 = vmatmul.mubr.bf16.gmra.mrb[0].mxu0 %v1767
    %v1972 = vpop.f32.mrb[0].mxu0
    %v1973 = vadd.f32 0.0, %v1972
    %v1974 = vpop.f32.mrb[0].mxu0
    %v1975 = vpop.f32.mrb[0].mxu0
    %v1976 = vpop.f32.mrb[0].mxu0
    %1977 = vdwg.mxu0
    %v1986 = vunpack.c.l.b16 %v1689
    %v1987 = vunpack.c.h.b16 %v1689
    %v1988 = vunpack.c.l.b16 %v1690
    %v1989 = vunpack.c.l.b16 %v1691
    %v1990 = vunpack.c.h.b16 %v1691
    %v1991 = vunpack.c.l.b16 %v1692
    %v1992 = vunpack.c.l.b16 %v1693
    %v1993 = vunpack.c.h.b16 %v1693
    %v1994 = vunpack.c.l.b16 %v1694
    %v1995 = vunpack.c.l.b16 %v1695
    %v1996 = vunpack.c.h.b16 %v1695
    %v1997 = vunpack.c.l.b16 %v1696
    %v1998 = vpack.c.b16 %v1989, %v1986
    %v1999 = vpack.c.b16 %v1990, %v1987
    %v2000 = vpack.c.b16 %v1991, %v1988
    %v2001 = vpack.c.b16 %v1995, %v1992
    %v2002 = vpack.c.b16 %v1996, %v1993
    %v2003 = vpack.c.b16 %v1997, %v1994
    %vm2010 = vcmask 261120
    %v2012 = vsel %vm2010, %v1688, 0
    %2014 = vmatprep.subr.bf16.mxu0 %v1999
    %2015 = vmatpush1.bf16.msra.mxu0 %v1998
    %2016 = vmatprep.subr.bf16.mxu0 %v2002
    %2017 = vmatpush1.bf16.msra.mxu0 %v2001
    %2018 = vmatprep.subr.bf16.mxu0 0
    %2019 = vmatpush1.bf16.msra.mxu0 0
    %2020 = vmatprep.subr.bf16.mxu0 0
    %2021 = vmatpush1.bf16.msra.mxu0 0
    %2022 = vmatprep.subr.bf16.mxu0 0
    %2023 = vmatpush1.bf16.msra.mxu0 0
    %2024 = vmatprep.subr.bf16.mxu0 0
    %2025 = vmatpush1.bf16.msra.mxu0 0
    %2026 = vmatprep.subr.bf16.mxu0 0
    %2027 = vmatpush1.bf16.msra.mxu0 0
    %2028 = vmatprep.subr.bf16.mxu0 0
    %2029 = vmatpush1.bf16.msra.mxu0 0
    %2030 = vmatprep.subr.bf16.mxu0 0
    %2031 = vmatpush1.bf16.msra.mxu0 0
    %2032 = vmatprep.subr.bf16.mxu0 0
    %2033 = vmatpush1.bf16.msra.mxu0 0
    %2034 = vmatprep.subr.bf16.mxu0 0
    %2035 = vmatpush1.bf16.msra.mxu0 0
    %2036 = vmatprep.subr.bf16.mxu0 0
    %2037 = vmatpush1.bf16.msra.mxu0 0
    %2038 = vmatprep.subr.bf16.mxu0 0
    %2039 = vmatpush1.bf16.msra.mxu0 0
    %2040 = vmatprep.subr.bf16.mxu0 0
    %2041 = vmatpush1.bf16.msra.mxu0 0
    %2042 = vmatprep.subr.bf16.mxu0 0
    %2043 = vmatpush1.bf16.msra.mxu0 0
    %2044 = vmatprep.subr.bf16.mxu0 0
    %2045 = vmatpush1.bf16.msra.mxu0 0
    %2046 = vmatprep.mubr.bf16.mxu0 0
    %2047 = vmatmul.mubr.bf16.gmra.mrb[0].mxu0 %v2012
    %v2048 = vpop.f32.mrb[0].mxu0
    %v2049 = vadd.f32 %v1932, %v2048
    %v2050 = vpop.f32.mrb[0].mxu0
    %v2051 = vadd.f32 %v1934, %v2050
    %v2052 = vpop.f32.mrb[0].mxu0
    %v2053 = vpop.f32.mrb[0].mxu0
    %2054 = vdwg.mxu0
    %2055 = vmatprep.subr.bf16.mxu0 0
    %2056 = vmatpush1.bf16.msra.mxu0 %v2000
    %2057 = vmatprep.subr.bf16.mxu0 0
    %2058 = vmatpush1.bf16.msra.mxu0 %v2003
    %2059 = vmatprep.subr.bf16.mxu0 0
    %2060 = vmatpush1.bf16.msra.mxu0 0
    %2061 = vmatprep.subr.bf16.mxu0 0
    %2062 = vmatpush1.bf16.msra.mxu0 0
    %2063 = vmatprep.subr.bf16.mxu0 0
    %2064 = vmatpush1.bf16.msra.mxu0 0
    %2065 = vmatprep.subr.bf16.mxu0 0
    %2066 = vmatpush1.bf16.msra.mxu0 0
    %2067 = vmatprep.subr.bf16.mxu0 0
    %2068 = vmatpush1.bf16.msra.mxu0 0
    %2069 = vmatprep.subr.bf16.mxu0 0
    %2070 = vmatpush1.bf16.msra.mxu0 0
    %2071 = vmatprep.subr.bf16.mxu0 0
    %2072 = vmatpush1.bf16.msra.mxu0 0
    %2073 = vmatprep.subr.bf16.mxu0 0
    %2074 = vmatpush1.bf16.msra.mxu0 0
    %2075 = vmatprep.subr.bf16.mxu0 0
    %2076 = vmatpush1.bf16.msra.mxu0 0
    %2077 = vmatprep.subr.bf16.mxu0 0
    %2078 = vmatpush1.bf16.msra.mxu0 0
    %2079 = vmatprep.subr.bf16.mxu0 0
    %2080 = vmatpush1.bf16.msra.mxu0 0
    %2081 = vmatprep.subr.bf16.mxu0 0
    %2082 = vmatpush1.bf16.msra.mxu0 0
    %2083 = vmatprep.subr.bf16.mxu0 0
    %2084 = vmatpush1.bf16.msra.mxu0 0
    %2085 = vmatprep.subr.bf16.mxu0 0
    %2086 = vmatpush1.bf16.msra.mxu0 0
    %2087 = vmatprep.mubr.bf16.mxu0 0
    %2088 = vmatmul.mubr.bf16.gmra.mrb[0].mxu0 %v2012
    %v2089 = vpop.f32.mrb[0].mxu0
    %v2090 = vadd.f32 %v1973, %v2089
    %v2091 = vpop.f32.mrb[0].mxu0
    %v2092 = vpop.f32.mrb[0].mxu0
    %v2093 = vpop.f32.mrb[0].mxu0
    %2094 = vdwg.mxu0
    %v2095 = vld [vmem:[%s10] sm:$0x7]
    %v2097 = vlaneseq
    %v2098 = vshrl.u32 %v2097, 7
    %v2099 = vsub.s32 0, %v2098
    %v2100 = vrot.slane %v2095, %v2099
    %v2101 = vlaneseq
    %v2102 = vshrl.u32 %v2101, 7
    %v2103 = vsub.s32 1, %v2102
    %v2104 = vrot.slane %v2095, %v2103
    %v2105 = vlaneseq
    %v2106 = vshrl.u32 %v2105, 7
    %v2107 = vsub.s32 2, %v2106
    %v2108 = vrot.slane %v2095, %v2107
    %v2112 = vadd.f32 %v2049, %v2100
    %v2113 = vadd.f32 %v2051, %v2104
    %v2114 = vadd.f32 %v2090, %v2108
    %v2115 = vadd.f32 %v2112, %v299
    %v2116 = vxor.u32 %v2115, 2147483648
    %v2117 = vmul.f32 %v2116, 1.442695
    %v2118 = vpow.pop %v2117
    %v2119 = vadd.f32 %v2118, 1.0
    %v2120 = vrcp.pop %v2119
    %v2121 = vmul.f32 1.0, %v2120
    %v2122 = vadd.f32 %v2113, %v338
    %v2123 = vxor.u32 %v2122, 2147483648
    %v2124 = vmul.f32 %v2123, 1.442695
    %v2125 = vpow.pop %v2124
    %v2126 = vadd.f32 %v2125, 1.0
    %v2127 = vrcp.pop %v2126
    %v2128 = vmul.f32 1.0, %v2127
    %v2129 = vmul.f32 %v2121, %v340
    %v2130 = vadd.f32 %v2114, %v2129
    %v2131 = vtanh.pop %v2130
    %v2132 = vsub.f32 1.0, %v2128
    %v2133 = vmul.f32 %v2132, %v2131
    %v2134 = vmul.f32 %v2128, %v46
    %v2135 = vadd.f32 %v2133, %v2134
    %2136 = vst [vmem:[#allocation5] sm:$0xff] %v2135
    %v2137 = vpack.c.bf16 %v2135, %v2135
    %2138 = vst [vmem:[%s13] sm:$0xf] %v2137
    // Predicated region
    $region46: #{rnn_decoder_forward.2} parent=1 // pred_check
      _
    $region47: #{rnn_decoder_forward.2} parent=1 // pred_check_branch
      %2140 = sbr.rel (0) target = $region49
    $region48: #{rnn_decoder_forward.2} parent=1 // pred_region
      %s2142 = ssub.s32 128, 128
      %2143 = vsyncadd [#allocation4], %s2142
      %s2145 = sshll.u32 [#allocation3], 4
      %s2146 = int_to_ptr.vmem [resolvable:$true] %s2145
      %2148 = dma.vmem_to_hbm [thread:$0]  %s2146, 128, %s11, [#allocation4]
    $region49: #{rnn_decoder_forward.2} parent=1 // pred_fallthru
      _
    // Predicated region
    $region50: #{rnn_decoder_forward.2} parent=1 // pred_check
      _
    $region51: #{rnn_decoder_forward.2} parent=1 // pred_check_branch
      %2150 = sbr.rel (0) target = $region53
    $region52: #{rnn_decoder_forward.2} parent=1 // pred_region
      %s2152 = ssub.s32 128, 128
      %2153 = vsyncadd [#allocation6], %s2152
      %s2155 = sshll.u32 [#allocation5], 4
      %s2156 = int_to_ptr.vmem [resolvable:$true] %s2155
      %2158 = dma.vmem_to_hbm [thread:$0]  %s2156, 128, %s12, [#allocation6]
    $region53: #{rnn_decoder_forward.2} parent=1 // pred_fallthru
      _
    // Predicated region
    $region54: #{rnn_decoder_forward.2} parent=1 // pred_check
      _
    $region55: #{rnn_decoder_forward.2} parent=1 // pred_check_branch
      %2160 = sbr.rel (0) target = $region57
    $region56: #{rnn_decoder_forward.2} parent=1 // pred_region
      _
    $region57: #{rnn_decoder_forward.2} parent=1 // pred_fallthru
      _
    // Predicated region
    $region58: #{rnn_decoder_forward.2} parent=1 // pred_check
      _
    $region59: #{rnn_decoder_forward.2} parent=1 // pred_check_branch
      %2162 = sbr.rel (0) target = $region61
    $region60: #{rnn_decoder_forward.2} parent=1 // pred_region
      %2163 = dma.done [#allocation4], 128
    $region61: #{rnn_decoder_forward.2} parent=1 // pred_fallthru
      _
    // Predicated region
    $region62: #{rnn_decoder_forward.2} parent=1 // pred_check
      _
    $region63: #{rnn_decoder_forward.2} parent=1 // pred_check_branch
      %2165 = sbr.rel (0) target = $region65
    $region64: #{rnn_decoder_forward.2} parent=1 // pred_region
      %2166 = dma.done [#allocation6], 128
    $region65: #{rnn_decoder_forward.2} parent=1 // pred_fallthru
      _
    // Predicated region
    $region66: #{rnn_decoder_forward.2} parent=1 // pred_check
      _
    $region67: #{rnn_decoder_forward.2} parent=1 // pred_check_branch
      %2168 = sbr.rel (0) target = $region69
    $region68: #{rnn_decoder_forward.2} parent=1 // pred_region
      _
    $region69: #{rnn_decoder_forward.2} parent=1 // pred_fallthru
      _
    %2169 = vsyncpa [#allocation4], 1
    %2170 = vsyncpa [#allocation6], 1

</llo_original>
